<compile_context>
chip_gen: v7x
topology: tpu7x:2x2x1
jax: 0.10.0
libtpu: 0.0.40
codegen_flags: <defaults>
</compile_context>

<pallas_src>
import numpy as np
import jax
import jax.numpy as jnp
from jax.experimental import pallas as pl
from jax.experimental.pallas import tpu as pltpu


# ----------------------------- fused Pallas kernel ------------------------------

def _make_egat_fused_kernel(H, C, negative_slope=0.2):
    HC = H * C

    def kernel(x_ref, w_ref, ea_ref, we_ref,
               bdsrc_ref, bddst_ref, bdedge_ref, hmask_ref,
               srcc_ref, dstc_ref, dstr_ref, bias_ref, out_ref):
        f32 = jnp.float32
        N = x_ref.shape[0]
        E = ea_ref.shape[0]

        # 1) linear projections (MXU)
        xh = jnp.dot(x_ref[...], w_ref[...], preferred_element_type=f32)      # [N, H*C]
        eh = jnp.dot(ea_ref[...], we_ref[...], preferred_element_type=f32)    # [E, H*C]

        # 2) per-head attention scalars via block-diagonal matmuls (MXU):
        #    asrc[n, h] = sum_c xh[n, h*C + c] * att_src[h, c]
        asrc = jnp.dot(xh, bdsrc_ref[...], preferred_element_type=f32)        # [N, H]
        adst = jnp.dot(xh, bddst_ref[...], preferred_element_type=f32)        # [N, H]
        aedge = jnp.dot(eh, bdedge_ref[...], preferred_element_type=f32)      # [E, H]

        # 3) one-hot incidence matrices built in VMEM from the int32 edge index
        #    (no XLA scatter, no dense HBM adjacency traffic)
        col_iota = jax.lax.broadcasted_iota(jnp.int32, (E, N), 1)
        src_oh = (srcc_ref[...] == col_iota).astype(f32)                      # [E, N]  src one-hot
        dst_oh = (dstc_ref[...] == col_iota).astype(f32)                      # [E, N]  dst one-hot
        row_iota = jax.lax.broadcasted_iota(jnp.int32, (N, E), 0)
        dst_oh_t = (dstr_ref[...] == row_iota).astype(f32)                    # [N, E]  dst one-hot (T)

        # 4) per-edge logits: gather asrc[src_e], adst[dst_e] by matmul, add edge term,
        #    leaky_relu applied per edge (exactly as PyG does, before the softmax)
        e_logit = (jnp.dot(src_oh, asrc, preferred_element_type=f32)
                   + jnp.dot(dst_oh, adst, preferred_element_type=f32)
                   + aedge)                                                   # [E, H]
        e_logit = jnp.where(e_logit > 0, e_logit, negative_slope * e_logit)

        # 5) dense (dst, src) adjacency mask, shared by all heads
        #    (simple-graph assumption: no duplicate (dst, src) pairs; self loops guarantee
        #     every row has at least one valid entry, so the softmax denominator is > 0)
        adj = jnp.dot(dst_oh_t, src_oh, preferred_element_type=f32)           # [N, N]
        neg_big = jnp.float32(-1e30)

        # 6) per-head masked softmax + aggregation, all heads in ONE grid step,
        #    accumulated directly into the lane-dense concatenated [N, H*C] layout.
        acc = jnp.zeros((N, HC), f32)
        for h in range(H):                                                    # static unroll over heads
            # scatter per-edge logits of head h into the dense (dst, src) matrix via matmul
            logit_h = jnp.dot(dst_oh_t, src_oh * e_logit[:, h:h + 1],
                              preferred_element_type=f32)                     # [N_dst, N_src]
            logit_h = jnp.where(adj > 0, logit_h, neg_big)
            m = jnp.max(logit_h, axis=-1, keepdims=True)
            p = jnp.exp(logit_h - m)
            # normalize AFTER the aggregation matmul: N reciprocals instead of N*N divides
            # (approx=False kept for the tight accuracy check; flip to approx=True for EUP vrcp)
            inv = pl.reciprocal(jnp.sum(p, axis=-1, keepdims=True), approx=False)
            xh_h = xh * hmask_ref[h:h + 1, :]                                 # keep only head h columns
            acc = acc + jnp.dot(p, xh_h, preferred_element_type=f32) * inv
        out_ref[...] = acc + bias_ref[...]                                    # single lane-dense store

    return kernel


# ------------------------------ glue / wrapper ------------------------------

def add_self_loops_mean(edge_index, edge_attr, num_nodes):
    """PyG remove_self_loops + add_self_loops(fill_value='mean') -- one-time host preprocessing."""
    src, dst = edge_index[0], edge_index[1]
    keep = src != dst
    src, dst, edge_attr = src[keep], dst[keep], edge_attr[keep]
    sums = np.zeros((num_nodes, edge_attr.shape[1]), np.float32)
    np.add.at(sums, dst, edge_attr)
    counts = np.zeros((num_nodes,), np.float32)
    np.add.at(counts, dst, 1.0)
    loop_attr = sums / np.maximum(counts, 1.0)[:, None]
    loop = np.arange(num_nodes)
    src_full = np.concatenate([src, loop])
    dst_full = np.concatenate([dst, loop])
    attr_full = np.concatenate([edge_attr, loop_attr], axis=0)
    return np.stack([src_full, dst_full]).astype(np.int32), attr_full.astype(np.float32)


def egat_conv_forward(x, edge_index, edge_attr, params, num_heads, attention_concat=True):
    """Forward pass equivalent to EGATConv(layer_config, num_heads, attention_concat)."""
    W, We, att_src, att_dst, att_edge, bias = params
    N = x.shape[0]
    H = num_heads
    HC = W.shape[1]
    C = HC // H

    # graph restructuring (module semantics), host-side numpy, done once
    ei_full, ea_full = add_self_loops_mean(np.asarray(edge_index), np.asarray(edge_attr), N)
    src = ei_full[0].astype(np.int32)
    dst = ei_full[1].astype(np.int32)

    # one-time parameter repacking (host side): block-diagonal attention matrices so the
    # per-head reductions become MXU matmuls, plus per-head column masks for the output layout.
    def _block_diag(att):
        a = np.asarray(att, np.float32).reshape(H, C)
        m = np.zeros((HC, H), np.float32)
        for h in range(H):
            m[h * C:(h + 1) * C, h] = a[h]
        return jnp.asarray(m)

    bd_src, bd_dst, bd_edge = _block_diag(att_src), _block_diag(att_dst), _block_diag(att_edge)
    head_mask = np.zeros((H, HC), np.float32)
    for h in range(H):
        head_mask[h, h * C:(h + 1) * C] = 1.0
    head_mask = jnp.asarray(head_mask)

    src_col = jnp.asarray(src[:, None])          # [E, 1]
    dst_col = jnp.asarray(dst[:, None])          # [E, 1]
    dst_row = jnp.asarray(dst[None, :])          # [1, E]

    bias_f32 = jnp.asarray(bias, jnp.float32)
    bias2d = (bias_f32[None, :] if attention_concat
              else jnp.zeros((1, HC), jnp.float32))

    kernel = _make_egat_fused_kernel(H, C)
    out = pl.pallas_call(
        kernel,
        out_shape=jax.ShapeDtypeStruct((N, HC), jnp.float32),
    )(x.astype(jnp.float32), jnp.asarray(W, jnp.float32),
      jnp.asarray(ea_full), jnp.asarray(We, jnp.float32),
      bd_src, bd_dst, bd_edge, head_mask,
      src_col, dst_col, dst_row, bias2d)

    if not attention_concat:
        out = jnp.mean(out.reshape(N, H, C), axis=1) + bias_f32
    return out


# ------------------------------ pure-JAX reference ------------------------------

def ref_egat_conv(x, edge_index, edge_attr, params, num_heads, attention_concat=True):
    W, We, att_src, att_dst, att_edge, bias = params
    N = x.shape[0]
    H = num_heads
    C = W.shape[1] // H
    ei_full, ea_full = add_self_loops_mean(np.asarray(edge_index), np.asarray(edge_attr), N)
    src, dst = jnp.asarray(ei_full[0]), jnp.asarray(ei_full[1])
    ea_full = jnp.asarray(ea_full)

    xh = (x @ W).reshape(N, H, C)
    eh = (ea_full @ We).reshape(-1, H, C)
    asrc = jnp.sum(xh * att_src, axis=-1)
    adst = jnp.sum(xh * att_dst, axis=-1)
    aedge = jnp.sum(eh * att_edge, axis=-1)

    alpha = asrc[src] + adst[dst] + aedge                           # [E', H]
    alpha = jnp.where(alpha > 0, alpha, 0.2 * alpha)
    amax = jax.ops.segment_max(alpha, dst, num_segments=N)
    alpha = jnp.exp(alpha - amax[dst])
    denom = jax.ops.segment_sum(alpha, dst, num_segments=N)
    alpha = alpha / denom[dst]

    msg = xh[src] * alpha[..., None]
    out = jax.ops.segment_sum(msg, dst, num_segments=N)             # [N, H, C]
    if attention_concat:
        out = out.reshape(N, H * C)
    else:
        out = jnp.mean(out, axis=1)
    return out + bias


# ----------------------------------- main -----------------------------------

if __name__ == "__main__":
    # layer_config: dim_in=8, dim_out=32, edge_dim=6, has_bias=True;
    # num_heads=4, attention_concat=True  ->  per-head C = 32 // 4 = 8
    N, DIM_IN, DIM_OUT, EDGE_DIM, H = 16, 8, 32, 6, 4
    C = DIM_OUT // H

    key = jax.random.PRNGKey(0)
    k_x, k_ea, k_w, k_we, k_as, k_ad, k_ae, k_b = jax.random.split(key, 8)

    x = jax.random.normal(k_x, (N, DIM_IN), jnp.float32)

    # deterministic simple graph: ring + skip-3 edges (no self loops, no duplicates)
    src = np.concatenate([np.arange(N), np.arange(N)])
    dst = np.concatenate([(np.arange(N) + 1) % N, (np.arange(N) + 3) % N])
    edge_index = np.stack([src, dst]).astype(np.int32)              # [2, 32]
    edge_attr = jax.random.normal(k_ea, (edge_index.shape[1], EDGE_DIM), jnp.float32)

    # parameters (glorot-style uniform; deterministic synthetic init, not a checkpoint)
    def glorot(k, shape):
        fan_in, fan_out = shape[0], shape[1]
        lim = float(np.sqrt(6.0 / (fan_in + fan_out)))
        return jax.random.uniform(k, shape, jnp.float32, -lim, lim)

    W = glorot(k_w, (DIM_IN, H * C))                                # node lin (bias=False)
    We = glorot(k_we, (EDGE_DIM, H * C))                            # edge lin (bias=False)
    att_src = jax.random.uniform(k_as, (1, H, C), jnp.float32, -0.3, 0.3)
    att_dst = jax.random.uniform(k_ad, (1, H, C), jnp.float32, -0.3, 0.3)
    att_edge = jax.random.uniform(k_ae, (1, H, C), jnp.float32, -0.3, 0.3)
    bias = jax.random.uniform(k_b, (H * C,), jnp.float32, -0.1, 0.1)
    params = (W, We, att_src, att_dst, att_edge, bias)

    out = egat_conv_forward(x, edge_index, edge_attr, params, num_heads=H, attention_concat=True)
    out = jax.block_until_ready(out)

    ref = jax.block_until_ready(
        ref_egat_conv(x, edge_index, edge_attr, params, num_heads=H, attention_concat=True))
    np.testing.assert_allclose(np.asarray(out), np.asarray(ref), rtol=2e-4, atol=2e-4)

    print("KERNEL_OK")
</pallas_src>

<mosaic_0001>
module attributes {stable_mosaic.version = 11 : i64} {
  func.func @kernel(%arg0: memref<16x8xf32, #tpu.memory_space<vmem>>, %arg1: memref<8x32xf32, #tpu.memory_space<vmem>>, %arg2: memref<48x6xf32, #tpu.memory_space<vmem>>, %arg3: memref<6x32xf32, #tpu.memory_space<vmem>>, %arg4: memref<32x4xf32, #tpu.memory_space<vmem>>, %arg5: memref<32x4xf32, #tpu.memory_space<vmem>>, %arg6: memref<32x4xf32, #tpu.memory_space<vmem>>, %arg7: memref<4x32xf32, #tpu.memory_space<vmem>>, %arg8: memref<48x1xi32, #tpu.memory_space<vmem>>, %arg9: memref<48x1xi32, #tpu.memory_space<vmem>>, %arg10: memref<1x48xi32, #tpu.memory_space<vmem>>, %arg11: memref<1x32xf32, #tpu.memory_space<vmem>>, %arg12: memref<16x32xf32, #tpu.memory_space<vmem>>) attributes {dimension_semantics = [], scalar_prefetch = 0 : i64, scratch_operands = 0 : i64, tpu.core_type = #tpu.core_type<tc>} {
    %c0 = arith.constant 0 : index
    %c0_0 = arith.constant 0 : index
    %0 = vector.load %arg0[%c0, %c0_0] : memref<16x8xf32, #tpu.memory_space<vmem>>, vector<16x8xf32>
    %c0_1 = arith.constant 0 : index
    %c0_2 = arith.constant 0 : index
    %1 = vector.load %arg1[%c0_1, %c0_2] : memref<8x32xf32, #tpu.memory_space<vmem>>, vector<8x32xf32>
    %cst = arith.constant dense<0.000000e+00> : vector<16x32xf32>
    %2 = tpu.matmul %0, %1, %cst {dimension_numbers = #tpu.dot_dimension_numbers<[1], [0], [0], [1], [0, 0, 1, 1], [], []>} : vector<16x8xf32>, vector<8x32xf32>, vector<16x32xf32> -> vector<16x32xf32>
    %c0_3 = arith.constant 0 : index
    %c0_4 = arith.constant 0 : index
    %3 = vector.load %arg2[%c0_3, %c0_4] : memref<48x6xf32, #tpu.memory_space<vmem>>, vector<48x6xf32>
    %c0_5 = arith.constant 0 : index
    %c0_6 = arith.constant 0 : index
    %4 = vector.load %arg3[%c0_5, %c0_6] : memref<6x32xf32, #tpu.memory_space<vmem>>, vector<6x32xf32>
    %cst_7 = arith.constant dense<0.000000e+00> : vector<48x32xf32>
    %5 = tpu.matmul %3, %4, %cst_7 {dimension_numbers = #tpu.dot_dimension_numbers<[1], [0], [0], [1], [0, 0, 1, 1], [], []>} : vector<48x6xf32>, vector<6x32xf32>, vector<48x32xf32> -> vector<48x32xf32>
    %c0_8 = arith.constant 0 : index
    %c0_9 = arith.constant 0 : index
    %6 = vector.load %arg4[%c0_8, %c0_9] : memref<32x4xf32, #tpu.memory_space<vmem>>, vector<32x4xf32>
    %cst_10 = arith.constant dense<0.000000e+00> : vector<16x4xf32>
    %7 = tpu.matmul %2, %6, %cst_10 {dimension_numbers = #tpu.dot_dimension_numbers<[1], [0], [0], [1], [0, 0, 1, 1], [], []>} : vector<16x32xf32>, vector<32x4xf32>, vector<16x4xf32> -> vector<16x4xf32>
    %c0_11 = arith.constant 0 : index
    %c0_12 = arith.constant 0 : index
    %8 = vector.load %arg5[%c0_11, %c0_12] : memref<32x4xf32, #tpu.memory_space<vmem>>, vector<32x4xf32>
    %cst_13 = arith.constant dense<0.000000e+00> : vector<16x4xf32>
    %9 = tpu.matmul %2, %8, %cst_13 {dimension_numbers = #tpu.dot_dimension_numbers<[1], [0], [0], [1], [0, 0, 1, 1], [], []>} : vector<16x32xf32>, vector<32x4xf32>, vector<16x4xf32> -> vector<16x4xf32>
    %c0_14 = arith.constant 0 : index
    %c0_15 = arith.constant 0 : index
    %10 = vector.load %arg6[%c0_14, %c0_15] : memref<32x4xf32, #tpu.memory_space<vmem>>, vector<32x4xf32>
    %cst_16 = arith.constant dense<0.000000e+00> : vector<48x4xf32>
    %11 = tpu.matmul %5, %10, %cst_16 {dimension_numbers = #tpu.dot_dimension_numbers<[1], [0], [0], [1], [0, 0, 1, 1], [], []>} : vector<48x32xf32>, vector<32x4xf32>, vector<48x4xf32> -> vector<48x4xf32>
    %12 = tpu.iota {dimensions = array<i32: 1>} : vector<48x16xi32>
    %c0_17 = arith.constant 0 : index
    %c0_18 = arith.constant 0 : index
    %13 = vector.load %arg8[%c0_17, %c0_18] : memref<48x1xi32, #tpu.memory_space<vmem>>, vector<48x1xi32>
    %14 = vector.broadcast %13 : vector<48x1xi32> to vector<48x16xi32>
    %15 = arith.cmpi eq, %14, %12 : vector<48x16xi32>
    %16 = arith.extui %15 : vector<48x16xi1> to vector<48x16xi32>
    %17 = arith.sitofp %16 : vector<48x16xi32> to vector<48x16xf32>
    %c0_19 = arith.constant 0 : index
    %c0_20 = arith.constant 0 : index
    %18 = vector.load %arg9[%c0_19, %c0_20] : memref<48x1xi32, #tpu.memory_space<vmem>>, vector<48x1xi32>
    %19 = vector.broadcast %18 : vector<48x1xi32> to vector<48x16xi32>
    %20 = arith.cmpi eq, %19, %12 : vector<48x16xi32>
    %21 = arith.extui %20 : vector<48x16xi1> to vector<48x16xi32>
    %22 = arith.sitofp %21 : vector<48x16xi32> to vector<48x16xf32>
    %23 = tpu.iota {dimensions = array<i32: 0>} : vector<16x48xi32>
    %c0_21 = arith.constant 0 : index
    %c0_22 = arith.constant 0 : index
    %24 = vector.load %arg10[%c0_21, %c0_22] : memref<1x48xi32, #tpu.memory_space<vmem>>, vector<1x48xi32>
    %25 = vector.broadcast %24 : vector<1x48xi32> to vector<16x48xi32>
    %26 = arith.cmpi eq, %25, %23 : vector<16x48xi32>
    %27 = arith.extui %26 : vector<16x48xi1> to vector<16x48xi32>
    %28 = arith.sitofp %27 : vector<16x48xi32> to vector<16x48xf32>
    %cst_23 = arith.constant dense<0.000000e+00> : vector<48x4xf32>
    %29 = tpu.matmul %17, %7, %cst_23 {dimension_numbers = #tpu.dot_dimension_numbers<[1], [0], [0], [1], [0, 0, 1, 1], [], []>} : vector<48x16xf32>, vector<16x4xf32>, vector<48x4xf32> -> vector<48x4xf32>
    %cst_24 = arith.constant dense<0.000000e+00> : vector<48x4xf32>
    %30 = tpu.matmul %22, %9, %cst_24 {dimension_numbers = #tpu.dot_dimension_numbers<[1], [0], [0], [1], [0, 0, 1, 1], [], []>} : vector<48x16xf32>, vector<16x4xf32>, vector<48x4xf32> -> vector<48x4xf32>
    %31 = arith.addf %29, %30 : vector<48x4xf32>
    %32 = arith.addf %31, %11 : vector<48x4xf32>
    %cst_25 = arith.constant 0.000000e+00 : f32
    %33 = vector.broadcast %cst_25 : f32 to vector<48x4xf32>
    %34 = arith.cmpf ogt, %32, %33 : vector<48x4xf32>
    %cst_26 = arith.constant 2.000000e-01 : f32
    %35 = vector.broadcast %cst_26 : f32 to vector<48x4xf32>
    %36 = arith.mulf %35, %32 : vector<48x4xf32>
    %37 = arith.select %34, %32, %36 : vector<48x4xi1>, vector<48x4xf32>
    %cst_27 = arith.constant dense<0.000000e+00> : vector<16x16xf32>
    %38 = tpu.matmul %28, %17, %cst_27 {dimension_numbers = #tpu.dot_dimension_numbers<[1], [0], [0], [1], [0, 0, 1, 1], [], []>} : vector<16x48xf32>, vector<48x16xf32>, vector<16x16xf32> -> vector<16x16xf32>
    %cst_28 = arith.constant 0.000000e+00 : f32
    %39 = vector.broadcast %cst_28 : f32 to vector<16x32xf32>
    %40 = vector.extract_strided_slice %37 {offsets = [0, 0], sizes = [48, 1], strides = [1, 1]} : vector<48x4xf32> to vector<48x1xf32>
    %41 = vector.broadcast %40 : vector<48x1xf32> to vector<48x16xf32>
    %42 = arith.mulf %17, %41 : vector<48x16xf32>
    %cst_29 = arith.constant dense<0.000000e+00> : vector<16x16xf32>
    %43 = tpu.matmul %28, %42, %cst_29 {dimension_numbers = #tpu.dot_dimension_numbers<[1], [0], [0], [1], [0, 0, 1, 1], [], []>} : vector<16x48xf32>, vector<48x16xf32>, vector<16x16xf32> -> vector<16x16xf32>
    %cst_30 = arith.constant 0.000000e+00 : f32
    %44 = vector.broadcast %cst_30 : f32 to vector<16x16xf32>
    %45 = arith.cmpf ogt, %38, %44 : vector<16x16xf32>
    %cst_31 = arith.constant -1.000000e+30 : f32
    %46 = vector.broadcast %cst_31 : f32 to vector<16x16xf32>
    %47 = arith.select %45, %43, %46 : vector<16x16xi1>, vector<16x16xf32>
    %cst_32 = arith.constant dense<0xFF800000> : vector<16xf32>
    %48 = vector.multi_reduction <maximumf>, %47, %cst_32 [1] : vector<16x16xf32> to vector<16xf32>
    %49 = vector.shape_cast %48 : vector<16xf32> to vector<16x1xf32>
    %50 = vector.broadcast %49 : vector<16x1xf32> to vector<16x16xf32>
    %51 = arith.subf %47, %50 : vector<16x16xf32>
    %52 = math.exp %51 : vector<16x16xf32>
    %cst_33 = arith.constant dense<0.000000e+00> : vector<16xf32>
    %53 = vector.multi_reduction <add>, %52, %cst_33 [1] : vector<16x16xf32> to vector<16xf32>
    %54 = vector.shape_cast %53 : vector<16xf32> to vector<16x1xf32>
    %55 = tpu.reciprocal %54 : vector<16x1xf32> -> vector<16x1xf32>
    %c0_34 = arith.constant 0 : index
    %c0_35 = arith.constant 0 : index
    %56 = vector.load %arg7[%c0_34, %c0_35] : memref<4x32xf32, #tpu.memory_space<vmem>>, vector<1x32xf32>
    %57 = vector.broadcast %56 : vector<1x32xf32> to vector<16x32xf32>
    %58 = arith.mulf %2, %57 : vector<16x32xf32>
    %cst_36 = arith.constant dense<0.000000e+00> : vector<16x32xf32>
    %59 = tpu.matmul %52, %58, %cst_36 {dimension_numbers = #tpu.dot_dimension_numbers<[1], [0], [0], [1], [0, 0, 1, 1], [], []>} : vector<16x16xf32>, vector<16x32xf32>, vector<16x32xf32> -> vector<16x32xf32>
    %60 = vector.broadcast %55 : vector<16x1xf32> to vector<16x32xf32>
    %61 = arith.mulf %59, %60 : vector<16x32xf32>
    %62 = arith.addf %39, %61 : vector<16x32xf32>
    %63 = vector.extract_strided_slice %37 {offsets = [0, 1], sizes = [48, 1], strides = [1, 1]} : vector<48x4xf32> to vector<48x1xf32>
    %64 = vector.broadcast %63 : vector<48x1xf32> to vector<48x16xf32>
    %65 = arith.mulf %17, %64 : vector<48x16xf32>
    %cst_37 = arith.constant dense<0.000000e+00> : vector<16x16xf32>
    %66 = tpu.matmul %28, %65, %cst_37 {dimension_numbers = #tpu.dot_dimension_numbers<[1], [0], [0], [1], [0, 0, 1, 1], [], []>} : vector<16x48xf32>, vector<48x16xf32>, vector<16x16xf32> -> vector<16x16xf32>
    %cst_38 = arith.constant 0.000000e+00 : f32
    %67 = vector.broadcast %cst_38 : f32 to vector<16x16xf32>
    %68 = arith.cmpf ogt, %38, %67 : vector<16x16xf32>
    %cst_39 = arith.constant -1.000000e+30 : f32
    %69 = vector.broadcast %cst_39 : f32 to vector<16x16xf32>
    %70 = arith.select %68, %66, %69 : vector<16x16xi1>, vector<16x16xf32>
    %cst_40 = arith.constant dense<0xFF800000> : vector<16xf32>
    %71 = vector.multi_reduction <maximumf>, %70, %cst_40 [1] : vector<16x16xf32> to vector<16xf32>
    %72 = vector.shape_cast %71 : vector<16xf32> to vector<16x1xf32>
    %73 = vector.broadcast %72 : vector<16x1xf32> to vector<16x16xf32>
    %74 = arith.subf %70, %73 : vector<16x16xf32>
    %75 = math.exp %74 : vector<16x16xf32>
    %cst_41 = arith.constant dense<0.000000e+00> : vector<16xf32>
    %76 = vector.multi_reduction <add>, %75, %cst_41 [1] : vector<16x16xf32> to vector<16xf32>
    %77 = vector.shape_cast %76 : vector<16xf32> to vector<16x1xf32>
    %78 = tpu.reciprocal %77 : vector<16x1xf32> -> vector<16x1xf32>
    %c1 = arith.constant 1 : index
    %c0_42 = arith.constant 0 : index
    %79 = vector.load %arg7[%c1, %c0_42] : memref<4x32xf32, #tpu.memory_space<vmem>>, vector<1x32xf32>
    %80 = vector.broadcast %79 : vector<1x32xf32> to vector<16x32xf32>
    %81 = arith.mulf %2, %80 : vector<16x32xf32>
    %cst_43 = arith.constant dense<0.000000e+00> : vector<16x32xf32>
    %82 = tpu.matmul %75, %81, %cst_43 {dimension_numbers = #tpu.dot_dimension_numbers<[1], [0], [0], [1], [0, 0, 1, 1], [], []>} : vector<16x16xf32>, vector<16x32xf32>, vector<16x32xf32> -> vector<16x32xf32>
    %83 = vector.broadcast %78 : vector<16x1xf32> to vector<16x32xf32>
    %84 = arith.mulf %82, %83 : vector<16x32xf32>
    %85 = arith.addf %62, %84 : vector<16x32xf32>
    %86 = vector.extract_strided_slice %37 {offsets = [0, 2], sizes = [48, 1], strides = [1, 1]} : vector<48x4xf32> to vector<48x1xf32>
    %87 = vector.broadcast %86 : vector<48x1xf32> to vector<48x16xf32>
    %88 = arith.mulf %17, %87 : vector<48x16xf32>
    %cst_44 = arith.constant dense<0.000000e+00> : vector<16x16xf32>
    %89 = tpu.matmul %28, %88, %cst_44 {dimension_numbers = #tpu.dot_dimension_numbers<[1], [0], [0], [1], [0, 0, 1, 1], [], []>} : vector<16x48xf32>, vector<48x16xf32>, vector<16x16xf32> -> vector<16x16xf32>
    %cst_45 = arith.constant 0.000000e+00 : f32
    %90 = vector.broadcast %cst_45 : f32 to vector<16x16xf32>
    %91 = arith.cmpf ogt, %38, %90 : vector<16x16xf32>
    %cst_46 = arith.constant -1.000000e+30 : f32
    %92 = vector.broadcast %cst_46 : f32 to vector<16x16xf32>
    %93 = arith.select %91, %89, %92 : vector<16x16xi1>, vector<16x16xf32>
    %cst_47 = arith.constant dense<0xFF800000> : vector<16xf32>
    %94 = vector.multi_reduction <maximumf>, %93, %cst_47 [1] : vector<16x16xf32> to vector<16xf32>
    %95 = vector.shape_cast %94 : vector<16xf32> to vector<16x1xf32>
    %96 = vector.broadcast %95 : vector<16x1xf32> to vector<16x16xf32>
    %97 = arith.subf %93, %96 : vector<16x16xf32>
    %98 = math.exp %97 : vector<16x16xf32>
    %cst_48 = arith.constant dense<0.000000e+00> : vector<16xf32>
    %99 = vector.multi_reduction <add>, %98, %cst_48 [1] : vector<16x16xf32> to vector<16xf32>
    %100 = vector.shape_cast %99 : vector<16xf32> to vector<16x1xf32>
    %101 = tpu.reciprocal %100 : vector<16x1xf32> -> vector<16x1xf32>
    %c2 = arith.constant 2 : index
    %c0_49 = arith.constant 0 : index
    %102 = vector.load %arg7[%c2, %c0_49] : memref<4x32xf32, #tpu.memory_space<vmem>>, vector<1x32xf32>
    %103 = vector.broadcast %102 : vector<1x32xf32> to vector<16x32xf32>
    %104 = arith.mulf %2, %103 : vector<16x32xf32>
    %cst_50 = arith.constant dense<0.000000e+00> : vector<16x32xf32>
    %105 = tpu.matmul %98, %104, %cst_50 {dimension_numbers = #tpu.dot_dimension_numbers<[1], [0], [0], [1], [0, 0, 1, 1], [], []>} : vector<16x16xf32>, vector<16x32xf32>, vector<16x32xf32> -> vector<16x32xf32>
    %106 = vector.broadcast %101 : vector<16x1xf32> to vector<16x32xf32>
    %107 = arith.mulf %105, %106 : vector<16x32xf32>
    %108 = arith.addf %85, %107 : vector<16x32xf32>
    %109 = vector.extract_strided_slice %37 {offsets = [0, 3], sizes = [48, 1], strides = [1, 1]} : vector<48x4xf32> to vector<48x1xf32>
    %110 = vector.broadcast %109 : vector<48x1xf32> to vector<48x16xf32>
    %111 = arith.mulf %17, %110 : vector<48x16xf32>
    %cst_51 = arith.constant dense<0.000000e+00> : vector<16x16xf32>
    %112 = tpu.matmul %28, %111, %cst_51 {dimension_numbers = #tpu.dot_dimension_numbers<[1], [0], [0], [1], [0, 0, 1, 1], [], []>} : vector<16x48xf32>, vector<48x16xf32>, vector<16x16xf32> -> vector<16x16xf32>
    %cst_52 = arith.constant 0.000000e+00 : f32
    %113 = vector.broadcast %cst_52 : f32 to vector<16x16xf32>
    %114 = arith.cmpf ogt, %38, %113 : vector<16x16xf32>
    %cst_53 = arith.constant -1.000000e+30 : f32
    %115 = vector.broadcast %cst_53 : f32 to vector<16x16xf32>
    %116 = arith.select %114, %112, %115 : vector<16x16xi1>, vector<16x16xf32>
    %cst_54 = arith.constant dense<0xFF800000> : vector<16xf32>
    %117 = vector.multi_reduction <maximumf>, %116, %cst_54 [1] : vector<16x16xf32> to vector<16xf32>
    %118 = vector.shape_cast %117 : vector<16xf32> to vector<16x1xf32>
    %119 = vector.broadcast %118 : vector<16x1xf32> to vector<16x16xf32>
    %120 = arith.subf %116, %119 : vector<16x16xf32>
    %121 = math.exp %120 : vector<16x16xf32>
    %cst_55 = arith.constant dense<0.000000e+00> : vector<16xf32>
    %122 = vector.multi_reduction <add>, %121, %cst_55 [1] : vector<16x16xf32> to vector<16xf32>
    %123 = vector.shape_cast %122 : vector<16xf32> to vector<16x1xf32>
    %124 = tpu.reciprocal %123 : vector<16x1xf32> -> vector<16x1xf32>
    %c3 = arith.constant 3 : index
    %c0_56 = arith.constant 0 : index
    %125 = vector.load %arg7[%c3, %c0_56] : memref<4x32xf32, #tpu.memory_space<vmem>>, vector<1x32xf32>
    %126 = vector.broadcast %125 : vector<1x32xf32> to vector<16x32xf32>
    %127 = arith.mulf %2, %126 : vector<16x32xf32>
    %cst_57 = arith.constant dense<0.000000e+00> : vector<16x32xf32>
    %128 = tpu.matmul %121, %127, %cst_57 {dimension_numbers = #tpu.dot_dimension_numbers<[1], [0], [0], [1], [0, 0, 1, 1], [], []>} : vector<16x16xf32>, vector<16x32xf32>, vector<16x32xf32> -> vector<16x32xf32>
    %129 = vector.broadcast %124 : vector<16x1xf32> to vector<16x32xf32>
    %130 = arith.mulf %128, %129 : vector<16x32xf32>
    %131 = arith.addf %108, %130 : vector<16x32xf32>
    %c0_58 = arith.constant 0 : index
    %c0_59 = arith.constant 0 : index
    %132 = vector.load %arg11[%c0_58, %c0_59] : memref<1x32xf32, #tpu.memory_space<vmem>>, vector<1x32xf32>
    %133 = vector.broadcast %132 : vector<1x32xf32> to vector<16x32xf32>
    %134 = arith.addf %131, %133 : vector<16x32xf32>
    %c0_60 = arith.constant 0 : index
    %c0_61 = arith.constant 0 : index
    %135 = vector.load %arg12[%c0_60, %c0_61] : memref<16x32xf32, #tpu.memory_space<vmem>>, vector<16x32xf32>
    tpu.vector_store %arg12[%c0_60, %c0_61], %134 {strides = array<i32>} : memref<16x32xf32, #tpu.memory_space<vmem>>, vector<16x32xf32>,
    return
  }
}

</mosaic_0001>

<llo_original>
// kernel: tpu_custom_call.1
$region0: #{tpu_custom_call.1}
  #allocation0 [shape = 'u32[]', space=smem, size = 0x4, offset = 0x4, fixed_abs, tag = 'smem constant byte address 0x4 - core index']
  #allocation1 [shape = 'u32[144,128]{1,0:T(1,128)}', space=vmem, size = 0x12000, scoped, tag = 'internal scratch']
  %s0 = inlined_call_operand.vmem [shape: f32[16,8], index: 0, kind: input, shape index: {}]
  %s1 = inlined_call_operand.vmem [shape: f32[8,32], index: 1, kind: input, shape index: {}]
  %s2 = inlined_call_operand.vmem [shape: f32[48,6], index: 2, kind: input, shape index: {}]
  %s3 = inlined_call_operand.vmem [shape: f32[6,32], index: 3, kind: input, shape index: {}]
  %s4 = inlined_call_operand.vmem [shape: f32[32,4], index: 4, kind: input, shape index: {}]
  %s5 = inlined_call_operand.vmem [shape: f32[32,4], index: 5, kind: input, shape index: {}]
  %s6 = inlined_call_operand.vmem [shape: f32[32,4], index: 6, kind: input, shape index: {}]
  %s7 = inlined_call_operand.vmem [shape: f32[4,32], index: 7, kind: input, shape index: {}]
  %s8 = inlined_call_operand.vmem [shape: s32[48,1], index: 8, kind: input, shape index: {}]
  %s9 = inlined_call_operand.vmem [shape: s32[48,1], index: 9, kind: input, shape index: {}]
  %s10 = inlined_call_operand.vmem [shape: s32[1,48], index: 10, kind: input, shape index: {}]
  %s11 = inlined_call_operand.vmem [shape: f32[1,32], index: 11, kind: input, shape index: {}]
  %s12 = inlined_call_operand.hbm [shape: f32[16,32], index: 12, kind: output, shape index: {}]
  %s13 = sld [smem:[#allocation0]]
  $region58: #{tpu_custom_call.1} parent=0
    _
  %s15 = ssub.s32 1, %s13
  %s16 = scalar_select 0, %s15, %s13
  $region1: #{tpu_custom_call.1} parent=0
    #allocation2 [shape = 'u8[8192]{0}', space=vmem, size = 0x2000, scoped, tag = 'output window, operand 0, single buffered']
    #allocation3 [shape = 's32[1]{0}', space=sflag, size = 0x4, scoped, tag = 'scoped memory for tpu_custom_call.1']
    %17 = vsyncpa [#allocation3], 0
    // Predicated region
    $region2: #{tpu_custom_call.1} parent=1 // pred_check
      _
    $region3: #{tpu_custom_call.1} parent=1 // pred_check_branch
      %19 = sbr.rel (0) target = $region5
    $region4: #{tpu_custom_call.1} parent=1 // pred_region
      _
    $region5: #{tpu_custom_call.1} parent=1 // pred_fallthru
      _
    // Predicated region
    $region6: #{tpu_custom_call.1} parent=1 // pred_check
      _
    $region7: #{tpu_custom_call.1} parent=1 // pred_check_branch
      %21 = sbr.rel (0) target = $region9
    $region8: #{tpu_custom_call.1} parent=1 // pred_region
      _
    $region9: #{tpu_custom_call.1} parent=1 // pred_fallthru
      _
    // Predicated region
    $region10: #{tpu_custom_call.1} parent=1 // pred_check
      _
    $region11: #{tpu_custom_call.1} parent=1 // pred_check_branch
      %23 = sbr.rel (0) target = $region13
    $region12: #{tpu_custom_call.1} parent=1 // pred_region
      _
    $region13: #{tpu_custom_call.1} parent=1 // pred_fallthru
      _
    // Predicated region
    $region14: #{tpu_custom_call.1} parent=1 // pred_check
      _
    $region15: #{tpu_custom_call.1} parent=1 // pred_check_branch
      %25 = sbr.rel (0) target = $region17
    $region16: #{tpu_custom_call.1} parent=1 // pred_region
      _
    $region17: #{tpu_custom_call.1} parent=1 // pred_fallthru
      _
    // Predicated region
    $region18: #{tpu_custom_call.1} parent=1 // pred_check
      _
    $region19: #{tpu_custom_call.1} parent=1 // pred_check_branch
      %27 = sbr.rel (0) target = $region21
    $region20: #{tpu_custom_call.1} parent=1 // pred_region
      _
    $region21: #{tpu_custom_call.1} parent=1 // pred_fallthru
      _
    // Predicated region
    $region22: #{tpu_custom_call.1} parent=1 // pred_check
      _
    $region23: #{tpu_custom_call.1} parent=1 // pred_check_branch
      %29 = sbr.rel (0) target = $region25
    $region24: #{tpu_custom_call.1} parent=1 // pred_region
      _
    $region25: #{tpu_custom_call.1} parent=1 // pred_fallthru
      _
    // Predicated region
    $region26: #{tpu_custom_call.1} parent=1 // pred_check
      _
    $region27: #{tpu_custom_call.1} parent=1 // pred_check_branch
      %31 = sbr.rel (0) target = $region29
    $region28: #{tpu_custom_call.1} parent=1 // pred_region
      _
    $region29: #{tpu_custom_call.1} parent=1 // pred_fallthru
      _
    // Predicated region
    $region30: #{tpu_custom_call.1} parent=1 // pred_check
      _
    $region31: #{tpu_custom_call.1} parent=1 // pred_check_branch
      %33 = sbr.rel (0) target = $region33
    $region32: #{tpu_custom_call.1} parent=1 // pred_region
      _
    $region33: #{tpu_custom_call.1} parent=1 // pred_fallthru
      _
    // Predicated region
    $region34: #{tpu_custom_call.1} parent=1 // pred_check
      _
    $region35: #{tpu_custom_call.1} parent=1 // pred_check_branch
      %35 = sbr.rel (0) target = $region37
    $region36: #{tpu_custom_call.1} parent=1 // pred_region
      _
    $region37: #{tpu_custom_call.1} parent=1 // pred_fallthru
      _
    // Predicated region
    $region38: #{tpu_custom_call.1} parent=1 // pred_check
      _
    $region39: #{tpu_custom_call.1} parent=1 // pred_check_branch
      %37 = sbr.rel (0) target = $region41
    $region40: #{tpu_custom_call.1} parent=1 // pred_region
      _
    $region41: #{tpu_custom_call.1} parent=1 // pred_fallthru
      _
    // Predicated region
    $region42: #{tpu_custom_call.1} parent=1 // pred_check
      _
    $region43: #{tpu_custom_call.1} parent=1 // pred_check_branch
      %39 = sbr.rel (0) target = $region45
    $region44: #{tpu_custom_call.1} parent=1 // pred_region
      _
    $region45: #{tpu_custom_call.1} parent=1 // pred_fallthru
      _
    // Predicated region
    $region46: #{tpu_custom_call.1} parent=1 // pred_check
      _
    $region47: #{tpu_custom_call.1} parent=1 // pred_check_branch
      %41 = sbr.rel (0) target = $region49
    $region48: #{tpu_custom_call.1} parent=1 // pred_region
      _
    $region49: #{tpu_custom_call.1} parent=1 // pred_fallthru
      _
    %v42 = vld [vmem:[%s0] sm:$0xff]
    %v43 = vld [vmem:[%s0 + $0x8] sm:$0xff]
    %v44 = vld [vmem:[%s1] sm:$0xff]
    %vm45 = vcmask 64512
    %v47 = vsel %vm45, %v42, 0
    %v50 = vsel %vm45, %v43, 0
    %52 = vmatprep.subr.mxu0 0.0
    %53 = vmatpush1.msra.mxu0 %v44
    %54 = vmatprep.subr.mxu0 0.0
    %55 = vmatpush1.msra.mxu0 0.0
    %56 = vmatprep.subr.mxu0 0.0
    %57 = vmatpush1.msra.mxu0 0.0
    %58 = vmatprep.subr.mxu0 0.0
    %59 = vmatpush1.msra.mxu0 0.0
    %60 = vmatprep.subr.mxu0 0.0
    %61 = vmatpush1.msra.mxu0 0.0
    %62 = vmatprep.subr.mxu0 0.0
    %63 = vmatpush1.msra.mxu0 0.0
    %64 = vmatprep.subr.mxu0 0.0
    %65 = vmatpush1.msra.mxu0 0.0
    %66 = vmatprep.subr.mxu0 0.0
    %67 = vmatpush1.msra.mxu0 0.0
    %68 = vmatprep.subr.mxu0 0.0
    %69 = vmatpush1.msra.mxu0 0.0
    %70 = vmatprep.subr.mxu0 0.0
    %71 = vmatpush1.msra.mxu0 0.0
    %72 = vmatprep.subr.mxu0 0.0
    %73 = vmatpush1.msra.mxu0 0.0
    %74 = vmatprep.subr.mxu0 0.0
    %75 = vmatpush1.msra.mxu0 0.0
    %76 = vmatprep.subr.mxu0 0.0
    %77 = vmatpush1.msra.mxu0 0.0
    %78 = vmatprep.subr.mxu0 0.0
    %79 = vmatpush1.msra.mxu0 0.0
    %80 = vmatprep.subr.mxu0 0.0
    %81 = vmatpush1.msra.mxu0 0.0
    %82 = vmatprep.subr.mxu0 0.0
    %83 = vmatpush1.msra.mxu0 0.0
    %84 = vmatprep.subr.mxu0 0.0
    %85 = vmatpush1.msra.mxu0 0.0
    %86 = vmatprep.subr.mxu0 0.0
    %87 = vmatpush1.msra.mxu0 0.0
    %88 = vmatprep.subr.mxu0 0.0
    %89 = vmatpush1.msra.mxu0 0.0
    %90 = vmatprep.subr.mxu0 0.0
    %91 = vmatpush1.msra.mxu0 0.0
    %92 = vmatprep.subr.mxu0 0.0
    %93 = vmatpush1.msra.mxu0 0.0
    %94 = vmatprep.subr.mxu0 0.0
    %95 = vmatpush1.msra.mxu0 0.0
    %96 = vmatprep.subr.mxu0 0.0
    %97 = vmatpush1.msra.mxu0 0.0
    %98 = vmatprep.subr.mxu0 0.0
    %99 = vmatpush1.msra.mxu0 0.0
    %100 = vmatprep.subr.mxu0 0.0
    %101 = vmatpush1.msra.mxu0 0.0
    %102 = vmatprep.subr.mxu0 0.0
    %103 = vmatpush1.msra.mxu0 0.0
    %104 = vmatprep.subr.mxu0 0.0
    %105 = vmatpush1.msra.mxu0 0.0
    %106 = vmatprep.subr.mxu0 0.0
    %107 = vmatpush1.msra.mxu0 0.0
    %108 = vmatprep.subr.mxu0 0.0
    %109 = vmatpush1.msra.mxu0 0.0
    %110 = vmatprep.subr.mxu0 0.0
    %111 = vmatpush1.msra.mxu0 0.0
    %112 = vmatprep.subr.mxu0 0.0
    %113 = vmatpush1.msra.mxu0 0.0
    %114 = vmatprep.subr.mxu0 0.0
    %115 = vmatpush1.msra.mxu0 0.0
    %116 = vmatprep.mubr.f32.mxu0 0.0
    %117 = vmatmul.mubr.f32.gmra.mrb[0].mxu0 %v47
    %v118 = vpop.f32.mrb[0].mxu0
    %v119 = vadd.f32 0.0, %v118
    %v120 = vpop.f32.mrb[0].mxu0
    %121 = vmatprep.mubr.f32.mxu0 0.0
    %122 = vmatmul.mubr.f32.gmra.mrb[0].mxu0 %v50
    %v123 = vpop.f32.mrb[0].mxu0
    %v124 = vadd.f32 0.0, %v123
    %v125 = vpop.f32.mrb[0].mxu0
    %126 = vdwg.mxu0
    %v127 = vld [vmem:[%s2] sm:$0xff]
    %v128 = vld [vmem:[%s2 + $0x8] sm:$0xff]
    %v129 = vld [vmem:[%s2 + $0x10] sm:$0xff]
    %v130 = vld [vmem:[%s2 + $0x18] sm:$0xff]
    %v131 = vld [vmem:[%s2 + $0x20] sm:$0xff]
    %v132 = vld [vmem:[%s2 + $0x28] sm:$0xff]
    %v133 = vld [vmem:[%s3] sm:$0x3f]
    %vm134 = vcmask 48128
    %v136 = vsel %vm134, %v127, 0
    %v139 = vsel %vm134, %v128, 0
    %v142 = vsel %vm134, %v129, 0
    %v145 = vsel %vm134, %v130, 0
    %v148 = vsel %vm134, %v131, 0
    %v151 = vsel %vm134, %v132, 0
    %vm153 = vcmask 1045504
    %v155 = vsel %vm153, %v133, 0
    %157 = vmatprep.subr.mxu0 0.0
    %158 = vmatpush1.msra.mxu0 %v155
    %159 = vmatprep.subr.mxu0 0.0
    %160 = vmatpush1.msra.mxu0 0.0
    %161 = vmatprep.subr.mxu0 0.0
    %162 = vmatpush1.msra.mxu0 0.0
    %163 = vmatprep.subr.mxu0 0.0
    %164 = vmatpush1.msra.mxu0 0.0
    %165 = vmatprep.subr.mxu0 0.0
    %166 = vmatpush1.msra.mxu0 0.0
    %167 = vmatprep.subr.mxu0 0.0
    %168 = vmatpush1.msra.mxu0 0.0
    %169 = vmatprep.subr.mxu0 0.0
    %170 = vmatpush1.msra.mxu0 0.0
    %171 = vmatprep.subr.mxu0 0.0
    %172 = vmatpush1.msra.mxu0 0.0
    %173 = vmatprep.subr.mxu0 0.0
    %174 = vmatpush1.msra.mxu0 0.0
    %175 = vmatprep.subr.mxu0 0.0
    %176 = vmatpush1.msra.mxu0 0.0
    %177 = vmatprep.subr.mxu0 0.0
    %178 = vmatpush1.msra.mxu0 0.0
    %179 = vmatprep.subr.mxu0 0.0
    %180 = vmatpush1.msra.mxu0 0.0
    %181 = vmatprep.subr.mxu0 0.0
    %182 = vmatpush1.msra.mxu0 0.0
    %183 = vmatprep.subr.mxu0 0.0
    %184 = vmatpush1.msra.mxu0 0.0
    %185 = vmatprep.subr.mxu0 0.0
    %186 = vmatpush1.msra.mxu0 0.0
    %187 = vmatprep.subr.mxu0 0.0
    %188 = vmatpush1.msra.mxu0 0.0
    %189 = vmatprep.subr.mxu0 0.0
    %190 = vmatpush1.msra.mxu0 0.0
    %191 = vmatprep.subr.mxu0 0.0
    %192 = vmatpush1.msra.mxu0 0.0
    %193 = vmatprep.subr.mxu0 0.0
    %194 = vmatpush1.msra.mxu0 0.0
    %195 = vmatprep.subr.mxu0 0.0
    %196 = vmatpush1.msra.mxu0 0.0
    %197 = vmatprep.subr.mxu0 0.0
    %198 = vmatpush1.msra.mxu0 0.0
    %199 = vmatprep.subr.mxu0 0.0
    %200 = vmatpush1.msra.mxu0 0.0
    %201 = vmatprep.subr.mxu0 0.0
    %202 = vmatpush1.msra.mxu0 0.0
    %203 = vmatprep.subr.mxu0 0.0
    %204 = vmatpush1.msra.mxu0 0.0
    %205 = vmatprep.subr.mxu0 0.0
    %206 = vmatpush1.msra.mxu0 0.0
    %207 = vmatprep.subr.mxu0 0.0
    %208 = vmatpush1.msra.mxu0 0.0
    %209 = vmatprep.subr.mxu0 0.0
    %210 = vmatpush1.msra.mxu0 0.0
    %211 = vmatprep.subr.mxu0 0.0
    %212 = vmatpush1.msra.mxu0 0.0
    %213 = vmatprep.subr.mxu0 0.0
    %214 = vmatpush1.msra.mxu0 0.0
    %215 = vmatprep.subr.mxu0 0.0
    %216 = vmatpush1.msra.mxu0 0.0
    %217 = vmatprep.subr.mxu0 0.0
    %218 = vmatpush1.msra.mxu0 0.0
    %219 = vmatprep.subr.mxu0 0.0
    %220 = vmatpush1.msra.mxu0 0.0
    %221 = vmatprep.mubr.f32.mxu0 0.0
    %222 = vmatmul.mubr.f32.gmra.mrb[0].mxu0 %v136
    %v223 = vpop.f32.mrb[0].mxu0
    %v224 = vadd.f32 0.0, %v223
    %v225 = vpop.f32.mrb[0].mxu0
    %226 = vmatprep.mubr.f32.mxu0 0.0
    %227 = vmatmul.mubr.f32.gmra.mrb[0].mxu0 %v139
    %v228 = vpop.f32.mrb[0].mxu0
    %v229 = vadd.f32 0.0, %v228
    %v230 = vpop.f32.mrb[0].mxu0
    %231 = vmatprep.mubr.f32.mxu0 0.0
    %232 = vmatmul.mubr.f32.gmra.mrb[0].mxu0 %v142
    %v233 = vpop.f32.mrb[0].mxu0
    %v234 = vadd.f32 0.0, %v233
    %v235 = vpop.f32.mrb[0].mxu0
    %236 = vmatprep.mubr.f32.mxu0 0.0
    %237 = vmatmul.mubr.f32.gmra.mrb[0].mxu0 %v145
    %v238 = vpop.f32.mrb[0].mxu0
    %v239 = vadd.f32 0.0, %v238
    %v240 = vpop.f32.mrb[0].mxu0
    %241 = vmatprep.mubr.f32.mxu0 0.0
    %242 = vmatmul.mubr.f32.gmra.mrb[0].mxu0 %v148
    %v243 = vpop.f32.mrb[0].mxu0
    %v244 = vadd.f32 0.0, %v243
    %v245 = vpop.f32.mrb[0].mxu0
    %246 = vmatprep.mubr.f32.mxu0 0.0
    %247 = vmatmul.mubr.f32.gmra.mrb[0].mxu0 %v151
    %v248 = vpop.f32.mrb[0].mxu0
    %v249 = vadd.f32 0.0, %v248
    %v250 = vpop.f32.mrb[0].mxu0
    %251 = vdwg.mxu0
    %v252 = vld [vmem:[%s4] sm:$0xff]
    %v253 = vld [vmem:[%s4 + $0x8] sm:$0xff]
    %v254 = vld [vmem:[%s4 + $0x10] sm:$0xff]
    %v255 = vld [vmem:[%s4 + $0x18] sm:$0xff]
    %vm256 = vcmask 261120
    %v258 = vsel %vm256, %v119, 0
    %v261 = vsel %vm256, %v124, 0
    %263 = vmatprep.subr.mxu0 0.0
    %264 = vmatpush1.msra.mxu0 %v252
    %265 = vmatprep.subr.mxu0 0.0
    %266 = vmatpush1.msra.mxu0 %v253
    %267 = vmatprep.subr.mxu0 0.0
    %268 = vmatpush1.msra.mxu0 %v254
    %269 = vmatprep.subr.mxu0 0.0
    %270 = vmatpush1.msra.mxu0 %v255
    %271 = vmatprep.subr.mxu0 0.0
    %272 = vmatpush1.msra.mxu0 0.0
    %273 = vmatprep.subr.mxu0 0.0
    %274 = vmatpush1.msra.mxu0 0.0
    %275 = vmatprep.subr.mxu0 0.0
    %276 = vmatpush1.msra.mxu0 0.0
    %277 = vmatprep.subr.mxu0 0.0
    %278 = vmatpush1.msra.mxu0 0.0
    %279 = vmatprep.subr.mxu0 0.0
    %280 = vmatpush1.msra.mxu0 0.0
    %281 = vmatprep.subr.mxu0 0.0
    %282 = vmatpush1.msra.mxu0 0.0
    %283 = vmatprep.subr.mxu0 0.0
    %284 = vmatpush1.msra.mxu0 0.0
    %285 = vmatprep.subr.mxu0 0.0
    %286 = vmatpush1.msra.mxu0 0.0
    %287 = vmatprep.subr.mxu0 0.0
    %288 = vmatpush1.msra.mxu0 0.0
    %289 = vmatprep.subr.mxu0 0.0
    %290 = vmatpush1.msra.mxu0 0.0
    %291 = vmatprep.subr.mxu0 0.0
    %292 = vmatpush1.msra.mxu0 0.0
    %293 = vmatprep.subr.mxu0 0.0
    %294 = vmatpush1.msra.mxu0 0.0
    %295 = vmatprep.subr.mxu0 0.0
    %296 = vmatpush1.msra.mxu0 0.0
    %297 = vmatprep.subr.mxu0 0.0
    %298 = vmatpush1.msra.mxu0 0.0
    %299 = vmatprep.subr.mxu0 0.0
    %300 = vmatpush1.msra.mxu0 0.0
    %301 = vmatprep.subr.mxu0 0.0
    %302 = vmatpush1.msra.mxu0 0.0
    %303 = vmatprep.subr.mxu0 0.0
    %304 = vmatpush1.msra.mxu0 0.0
    %305 = vmatprep.subr.mxu0 0.0
    %306 = vmatpush1.msra.mxu0 0.0
    %307 = vmatprep.subr.mxu0 0.0
    %308 = vmatpush1.msra.mxu0 0.0
    %309 = vmatprep.subr.mxu0 0.0
    %310 = vmatpush1.msra.mxu0 0.0
    %311 = vmatprep.subr.mxu0 0.0
    %312 = vmatpush1.msra.mxu0 0.0
    %313 = vmatprep.subr.mxu0 0.0
    %314 = vmatpush1.msra.mxu0 0.0
    %315 = vmatprep.subr.mxu0 0.0
    %316 = vmatpush1.msra.mxu0 0.0
    %317 = vmatprep.subr.mxu0 0.0
    %318 = vmatpush1.msra.mxu0 0.0
    %319 = vmatprep.subr.mxu0 0.0
    %320 = vmatpush1.msra.mxu0 0.0
    %321 = vmatprep.subr.mxu0 0.0
    %322 = vmatpush1.msra.mxu0 0.0
    %323 = vmatprep.subr.mxu0 0.0
    %324 = vmatpush1.msra.mxu0 0.0
    %325 = vmatprep.subr.mxu0 0.0
    %326 = vmatpush1.msra.mxu0 0.0
    %327 = vmatprep.mubr.f32.mxu0 0.0
    %328 = vmatmul.mubr.f32.gmra.mrb[0].mxu0 %v258
    %v329 = vpop.f32.mrb[0].mxu0
    %v330 = vadd.f32 0.0, %v329
    %v331 = vpop.f32.mrb[0].mxu0
    %332 = vmatprep.mubr.f32.mxu0 0.0
    %333 = vmatmul.mubr.f32.gmra.mrb[0].mxu0 %v261
    %v334 = vpop.f32.mrb[0].mxu0
    %v335 = vadd.f32 0.0, %v334
    %v336 = vpop.f32.mrb[0].mxu0
    %337 = vdwg.mxu0
    %v338 = vld [vmem:[%s5] sm:$0xff]
    %v339 = vld [vmem:[%s5 + $0x8] sm:$0xff]
    %v340 = vld [vmem:[%s5 + $0x10] sm:$0xff]
    %v341 = vld [vmem:[%s5 + $0x18] sm:$0xff]
    %342 = vmatprep.subr.mxu0 0.0
    %343 = vmatpush1.msra.mxu0 %v338
    %344 = vmatprep.subr.mxu0 0.0
    %345 = vmatpush1.msra.mxu0 %v339
    %346 = vmatprep.subr.mxu0 0.0
    %347 = vmatpush1.msra.mxu0 %v340
    %348 = vmatprep.subr.mxu0 0.0
    %349 = vmatpush1.msra.mxu0 %v341
    %350 = vmatprep.subr.mxu0 0.0
    %351 = vmatpush1.msra.mxu0 0.0
    %352 = vmatprep.subr.mxu0 0.0
    %353 = vmatpush1.msra.mxu0 0.0
    %354 = vmatprep.subr.mxu0 0.0
    %355 = vmatpush1.msra.mxu0 0.0
    %356 = vmatprep.subr.mxu0 0.0
    %357 = vmatpush1.msra.mxu0 0.0
    %358 = vmatprep.subr.mxu0 0.0
    %359 = vmatpush1.msra.mxu0 0.0
    %360 = vmatprep.subr.mxu0 0.0
    %361 = vmatpush1.msra.mxu0 0.0
    %362 = vmatprep.subr.mxu0 0.0
    %363 = vmatpush1.msra.mxu0 0.0
    %364 = vmatprep.subr.mxu0 0.0
    %365 = vmatpush1.msra.mxu0 0.0
    %366 = vmatprep.subr.mxu0 0.0
    %367 = vmatpush1.msra.mxu0 0.0
    %368 = vmatprep.subr.mxu0 0.0
    %369 = vmatpush1.msra.mxu0 0.0
    %370 = vmatprep.subr.mxu0 0.0
    %371 = vmatpush1.msra.mxu0 0.0
    %372 = vmatprep.subr.mxu0 0.0
    %373 = vmatpush1.msra.mxu0 0.0
    %374 = vmatprep.subr.mxu0 0.0
    %375 = vmatpush1.msra.mxu0 0.0
    %376 = vmatprep.subr.mxu0 0.0
    %377 = vmatpush1.msra.mxu0 0.0
    %378 = vmatprep.subr.mxu0 0.0
    %379 = vmatpush1.msra.mxu0 0.0
    %380 = vmatprep.subr.mxu0 0.0
    %381 = vmatpush1.msra.mxu0 0.0
    %382 = vmatprep.subr.mxu0 0.0
    %383 = vmatpush1.msra.mxu0 0.0
    %384 = vmatprep.subr.mxu0 0.0
    %385 = vmatpush1.msra.mxu0 0.0
    %386 = vmatprep.subr.mxu0 0.0
    %387 = vmatpush1.msra.mxu0 0.0
    %388 = vmatprep.subr.mxu0 0.0
    %389 = vmatpush1.msra.mxu0 0.0
    %390 = vmatprep.subr.mxu0 0.0
    %391 = vmatpush1.msra.mxu0 0.0
    %392 = vmatprep.subr.mxu0 0.0
    %393 = vmatpush1.msra.mxu0 0.0
    %394 = vmatprep.subr.mxu0 0.0
    %395 = vmatpush1.msra.mxu0 0.0
    %396 = vmatprep.subr.mxu0 0.0
    %397 = vmatpush1.msra.mxu0 0.0
    %398 = vmatprep.subr.mxu0 0.0
    %399 = vmatpush1.msra.mxu0 0.0
    %400 = vmatprep.subr.mxu0 0.0
    %401 = vmatpush1.msra.mxu0 0.0
    %402 = vmatprep.subr.mxu0 0.0
    %403 = vmatpush1.msra.mxu0 0.0
    %404 = vmatprep.subr.mxu0 0.0
    %405 = vmatpush1.msra.mxu0 0.0
    %406 = vmatprep.mubr.f32.mxu0 0.0
    %407 = vmatmul.mubr.f32.gmra.mrb[0].mxu0 %v258
    %v408 = vpop.f32.mrb[0].mxu0
    %v409 = vadd.f32 0.0, %v408
    %v410 = vpop.f32.mrb[0].mxu0
    %411 = vmatprep.mubr.f32.mxu0 0.0
    %412 = vmatmul.mubr.f32.gmra.mrb[0].mxu0 %v261
    %v413 = vpop.f32.mrb[0].mxu0
    %v414 = vadd.f32 0.0, %v413
    %v415 = vpop.f32.mrb[0].mxu0
    %416 = vdwg.mxu0
    %v417 = vld [vmem:[%s6] sm:$0xff]
    %v418 = vld [vmem:[%s6 + $0x8] sm:$0xff]
    %v419 = vld [vmem:[%s6 + $0x10] sm:$0xff]
    %v420 = vld [vmem:[%s6 + $0x18] sm:$0xff]
    %v422 = vsel %vm256, %v224, 0
    %v425 = vsel %vm256, %v229, 0
    %v428 = vsel %vm256, %v234, 0
    %v431 = vsel %vm256, %v239, 0
    %v434 = vsel %vm256, %v244, 0
    %v437 = vsel %vm256, %v249, 0
    %439 = vmatprep.subr.mxu0 0.0
    %440 = vmatpush1.msra.mxu0 %v417
    %441 = vmatprep.subr.mxu0 0.0
    %442 = vmatpush1.msra.mxu0 %v418
    %443 = vmatprep.subr.mxu0 0.0
    %444 = vmatpush1.msra.mxu0 %v419
    %445 = vmatprep.subr.mxu0 0.0
    %446 = vmatpush1.msra.mxu0 %v420
    %447 = vmatprep.subr.mxu0 0.0
    %448 = vmatpush1.msra.mxu0 0.0
    %449 = vmatprep.subr.mxu0 0.0
    %450 = vmatpush1.msra.mxu0 0.0
    %451 = vmatprep.subr.mxu0 0.0
    %452 = vmatpush1.msra.mxu0 0.0
    %453 = vmatprep.subr.mxu0 0.0
    %454 = vmatpush1.msra.mxu0 0.0
    %455 = vmatprep.subr.mxu0 0.0
    %456 = vmatpush1.msra.mxu0 0.0
    %457 = vmatprep.subr.mxu0 0.0
    %458 = vmatpush1.msra.mxu0 0.0
    %459 = vmatprep.subr.mxu0 0.0
    %460 = vmatpush1.msra.mxu0 0.0
    %461 = vmatprep.subr.mxu0 0.0
    %462 = vmatpush1.msra.mxu0 0.0
    %463 = vmatprep.subr.mxu0 0.0
    %464 = vmatpush1.msra.mxu0 0.0
    %465 = vmatprep.subr.mxu0 0.0
    %466 = vmatpush1.msra.mxu0 0.0
    %467 = vmatprep.subr.mxu0 0.0
    %468 = vmatpush1.msra.mxu0 0.0
    %469 = vmatprep.subr.mxu0 0.0
    %470 = vmatpush1.msra.mxu0 0.0
    %471 = vmatprep.subr.mxu0 0.0
    %472 = vmatpush1.msra.mxu0 0.0
    %473 = vmatprep.subr.mxu0 0.0
    %474 = vmatpush1.msra.mxu0 0.0
    %475 = vmatprep.subr.mxu0 0.0
    %476 = vmatpush1.msra.mxu0 0.0
    %477 = vmatprep.subr.mxu0 0.0
    %478 = vmatpush1.msra.mxu0 0.0
    %479 = vmatprep.subr.mxu0 0.0
    %480 = vmatpush1.msra.mxu0 0.0
    %481 = vmatprep.subr.mxu0 0.0
    %482 = vmatpush1.msra.mxu0 0.0
    %483 = vmatprep.subr.mxu0 0.0
    %484 = vmatpush1.msra.mxu0 0.0
    %485 = vmatprep.subr.mxu0 0.0
    %486 = vmatpush1.msra.mxu0 0.0
    %487 = vmatprep.subr.mxu0 0.0
    %488 = vmatpush1.msra.mxu0 0.0
    %489 = vmatprep.subr.mxu0 0.0
    %490 = vmatpush1.msra.mxu0 0.0
    %491 = vmatprep.subr.mxu0 0.0
    %492 = vmatpush1.msra.mxu0 0.0
    %493 = vmatprep.subr.mxu0 0.0
    %494 = vmatpush1.msra.mxu0 0.0
    %495 = vmatprep.subr.mxu0 0.0
    %496 = vmatpush1.msra.mxu0 0.0
    %497 = vmatprep.subr.mxu0 0.0
    %498 = vmatpush1.msra.mxu0 0.0
    %499 = vmatprep.subr.mxu0 0.0
    %500 = vmatpush1.msra.mxu0 0.0
    %501 = vmatprep.subr.mxu0 0.0
    %502 = vmatpush1.msra.mxu0 0.0
    %503 = vmatprep.mubr.f32.mxu0 0.0
    %504 = vmatmul.mubr.f32.gmra.mrb[0].mxu0 %v422
    %v505 = vpop.f32.mrb[0].mxu0
    %v506 = vadd.f32 0.0, %v505
    %v507 = vpop.f32.mrb[0].mxu0
    %508 = vmatprep.mubr.f32.mxu0 0.0
    %509 = vmatmul.mubr.f32.gmra.mrb[0].mxu0 %v425
    %v510 = vpop.f32.mrb[0].mxu0
    %v511 = vadd.f32 0.0, %v510
    %v512 = vpop.f32.mrb[0].mxu0
    %513 = vmatprep.mubr.f32.mxu0 0.0
    %514 = vmatmul.mubr.f32.gmra.mrb[0].mxu0 %v428
    %v515 = vpop.f32.mrb[0].mxu0
    %v516 = vadd.f32 0.0, %v515
    %v517 = vpop.f32.mrb[0].mxu0
    %518 = vmatprep.mubr.f32.mxu0 0.0
    %519 = vmatmul.mubr.f32.gmra.mrb[0].mxu0 %v431
    %v520 = vpop.f32.mrb[0].mxu0
    %v521 = vadd.f32 0.0, %v520
    %v522 = vpop.f32.mrb[0].mxu0
    %523 = vmatprep.mubr.f32.mxu0 0.0
    %524 = vmatmul.mubr.f32.gmra.mrb[0].mxu0 %v434
    %v525 = vpop.f32.mrb[0].mxu0
    %v526 = vadd.f32 0.0, %v525
    %v527 = vpop.f32.mrb[0].mxu0
    %528 = vmatprep.mubr.f32.mxu0 0.0
    %529 = vmatmul.mubr.f32.gmra.mrb[0].mxu0 %v437
    %v530 = vpop.f32.mrb[0].mxu0
    %v531 = vadd.f32 0.0, %v530
    %v532 = vpop.f32.mrb[0].mxu0
    %533 = vdwg.mxu0
    %v534 = vlaneseq
    %v535 = vand.u32 %v534, 127
    %v536 = vld [vmem:[%s8] sm:$0xff]
    %v537 = vld [vmem:[%s8 + $0x8] sm:$0xff]
    %v538 = vld [vmem:[%s8 + $0x10] sm:$0xff]
    %v539 = vld [vmem:[%s8 + $0x18] sm:$0xff]
    %v540 = vld [vmem:[%s8 + $0x20] sm:$0xff]
    %v541 = vld [vmem:[%s8 + $0x28] sm:$0xff]
    %542 = vset.pattern.permute.xlu0 0
    %543 = vperm.xlu0 %542, %v536
    %v544 = vpop.permute.xlu0 %543
    %545 = vset.pattern.permute.xlu0 0
    %546 = vperm.xlu0 %545, %v537
    %v547 = vpop.permute.xlu0 %546
    %548 = vset.pattern.permute.xlu0 0
    %549 = vperm.xlu0 %548, %v538
    %v550 = vpop.permute.xlu0 %549
    %551 = vset.pattern.permute.xlu0 0
    %552 = vperm.xlu0 %551, %v539
    %v553 = vpop.permute.xlu0 %552
    %554 = vset.pattern.permute.xlu0 0
    %555 = vperm.xlu0 %554, %v540
    %v556 = vpop.permute.xlu0 %555
    %557 = vset.pattern.permute.xlu0 0
    %558 = vperm.xlu0 %557, %v541
    %v559 = vpop.permute.xlu0 %558
    %vm560 = vcmp.eq.s32.totalorder %v544, %v535
    %vm561 = vcmp.eq.s32.totalorder %v547, %v535
    %vm562 = vcmp.eq.s32.totalorder %v550, %v535
    %vm563 = vcmp.eq.s32.totalorder %v553, %v535
    %vm564 = vcmp.eq.s32.totalorder %v556, %v535
    %vm565 = vcmp.eq.s32.totalorder %v559, %v535
    %v566 = vsel %vm560, 1, 0
    %v567 = vsel %vm561, 1, 0
    %v568 = vsel %vm562, 1, 0
    %v569 = vsel %vm563, 1, 0
    %v570 = vsel %vm564, 1, 0
    %v571 = vsel %vm565, 1, 0
    %v572 = vcvt.s32.f32 %v566
    %v573 = vcvt.s32.f32 %v567
    %v574 = vcvt.s32.f32 %v568
    %v575 = vcvt.s32.f32 %v569
    %v576 = vcvt.s32.f32 %v570
    %v577 = vcvt.s32.f32 %v571
    %v578 = vld [vmem:[%s9] sm:$0xff]
    %v579 = vld [vmem:[%s9 + $0x8] sm:$0xff]
    %v580 = vld [vmem:[%s9 + $0x10] sm:$0xff]
    %v581 = vld [vmem:[%s9 + $0x18] sm:$0xff]
    %v582 = vld [vmem:[%s9 + $0x20] sm:$0xff]
    %v583 = vld [vmem:[%s9 + $0x28] sm:$0xff]
    %584 = vset.pattern.permute.xlu0 0
    %585 = vperm.xlu0 %584, %v578
    %v586 = vpop.permute.xlu0 %585
    %587 = vset.pattern.permute.xlu0 0
    %588 = vperm.xlu0 %587, %v579
    %v589 = vpop.permute.xlu0 %588
    %590 = vset.pattern.permute.xlu0 0
    %591 = vperm.xlu0 %590, %v580
    %v592 = vpop.permute.xlu0 %591
    %593 = vset.pattern.permute.xlu0 0
    %594 = vperm.xlu0 %593, %v581
    %v595 = vpop.permute.xlu0 %594
    %596 = vset.pattern.permute.xlu0 0
    %597 = vperm.xlu0 %596, %v582
    %v598 = vpop.permute.xlu0 %597
    %599 = vset.pattern.permute.xlu0 0
    %600 = vperm.xlu0 %599, %v583
    %v601 = vpop.permute.xlu0 %600
    %vm602 = vcmp.eq.s32.totalorder %v586, %v535
    %vm603 = vcmp.eq.s32.totalorder %v589, %v535
    %vm604 = vcmp.eq.s32.totalorder %v592, %v535
    %vm605 = vcmp.eq.s32.totalorder %v595, %v535
    %vm606 = vcmp.eq.s32.totalorder %v598, %v535
    %vm607 = vcmp.eq.s32.totalorder %v601, %v535
    %v608 = vsel %vm602, 1, 0
    %v609 = vsel %vm603, 1, 0
    %v610 = vsel %vm604, 1, 0
    %v611 = vsel %vm605, 1, 0
    %v612 = vsel %vm606, 1, 0
    %v613 = vsel %vm607, 1, 0
    %v614 = vcvt.s32.f32 %v608
    %v615 = vcvt.s32.f32 %v609
    %v616 = vcvt.s32.f32 %v610
    %v617 = vcvt.s32.f32 %v611
    %v618 = vcvt.s32.f32 %v612
    %v619 = vcvt.s32.f32 %v613
    %v620 = vlaneseq
    %v621 = vshrl.u32 %v620, 7
    %v622 = vadd.s32 %v621, 8
    %v623 = vld [vmem:[%s10] sm:$0x1]
    %v624 = vlaneseq
    %v625 = vshrl.u32 %v624, 7
    %v626 = vsub.s32 0, %v625
    %v627 = vrot.slane %v623, %v626
    %vm628 = vcmp.eq.s32.totalorder %v627, %v621
    %vm629 = vcmp.eq.s32.totalorder %v627, %v622
    %v630 = vsel %vm628, 1, 0
    %v631 = vsel %vm629, 1, 0
    %v632 = vcvt.s32.f32 %v630
    %v633 = vcvt.s32.f32 %v631
    %vm634 = vcmask 130048
    %v636 = vsel %vm634, %v614, 0
    %v639 = vsel %vm634, %v615, 0
    %v642 = vsel %vm634, %v616, 0
    %v645 = vsel %vm634, %v617, 0
    %v648 = vsel %vm634, %v618, 0
    %v651 = vsel %vm634, %v619, 0
    %653 = vmatprep.subr.mxu0 0.0
    %654 = vmatpush1.msra.mxu0 %v409
    %655 = vmatprep.subr.mxu0 0.0
    %656 = vmatpush1.msra.mxu0 %v414
    %657 = vmatprep.subr.mxu0 0.0
    %658 = vmatpush1.msra.mxu0 0.0
    %659 = vmatprep.subr.mxu0 0.0
    %660 = vmatpush1.msra.mxu0 0.0
    %661 = vmatprep.subr.mxu0 0.0
    %662 = vmatpush1.msra.mxu0 0.0
    %663 = vmatprep.subr.mxu0 0.0
    %664 = vmatpush1.msra.mxu0 0.0
    %665 = vmatprep.subr.mxu0 0.0
    %666 = vmatpush1.msra.mxu0 0.0
    %667 = vmatprep.subr.mxu0 0.0
    %668 = vmatpush1.msra.mxu0 0.0
    %669 = vmatprep.subr.mxu0 0.0
    %670 = vmatpush1.msra.mxu0 0.0
    %671 = vmatprep.subr.mxu0 0.0
    %672 = vmatpush1.msra.mxu0 0.0
    %673 = vmatprep.subr.mxu0 0.0
    %674 = vmatpush1.msra.mxu0 0.0
    %675 = vmatprep.subr.mxu0 0.0
    %676 = vmatpush1.msra.mxu0 0.0
    %677 = vmatprep.subr.mxu0 0.0
    %678 = vmatpush1.msra.mxu0 0.0
    %679 = vmatprep.subr.mxu0 0.0
    %680 = vmatpush1.msra.mxu0 0.0
    %681 = vmatprep.subr.mxu0 0.0
    %682 = vmatpush1.msra.mxu0 0.0
    %683 = vmatprep.subr.mxu0 0.0
    %684 = vmatpush1.msra.mxu0 0.0
    %685 = vmatprep.subr.mxu0 0.0
    %686 = vmatpush1.msra.mxu0 0.0
    %687 = vmatprep.subr.mxu0 0.0
    %688 = vmatpush1.msra.mxu0 0.0
    %689 = vmatprep.subr.mxu0 0.0
    %690 = vmatpush1.msra.mxu0 0.0
    %691 = vmatprep.subr.mxu0 0.0
    %692 = vmatpush1.msra.mxu0 0.0
    %693 = vmatprep.subr.mxu0 0.0
    %694 = vmatpush1.msra.mxu0 0.0
    %695 = vmatprep.subr.mxu0 0.0
    %696 = vmatpush1.msra.mxu0 0.0
    %697 = vmatprep.subr.mxu0 0.0
    %698 = vmatpush1.msra.mxu0 0.0
    %699 = vmatprep.subr.mxu0 0.0
    %700 = vmatpush1.msra.mxu0 0.0
    %701 = vmatprep.subr.mxu0 0.0
    %702 = vmatpush1.msra.mxu0 0.0
    %703 = vmatprep.subr.mxu0 0.0
    %704 = vmatpush1.msra.mxu0 0.0
    %705 = vmatprep.subr.mxu0 0.0
    %706 = vmatpush1.msra.mxu0 0.0
    %707 = vmatprep.subr.mxu0 0.0
    %708 = vmatpush1.msra.mxu0 0.0
    %709 = vmatprep.subr.mxu0 0.0
    %710 = vmatpush1.msra.mxu0 0.0
    %711 = vmatprep.subr.mxu0 0.0
    %712 = vmatpush1.msra.mxu0 0.0
    %713 = vmatprep.subr.mxu0 0.0
    %714 = vmatpush1.msra.mxu0 0.0
    %715 = vmatprep.subr.mxu0 0.0
    %716 = vmatpush1.msra.mxu0 0.0
    %717 = vmatprep.mubr.f32.mxu0 0.0
    %718 = vmatmul.mubr.f32.gmra.mrb[0].mxu0 %v636
    %v719 = vpop.f32.mrb[0].mxu0
    %v720 = vadd.f32 0.0, %v719
    %v721 = vpop.f32.mrb[0].mxu0
    %722 = vmatprep.mubr.f32.mxu0 0.0
    %723 = vmatmul.mubr.f32.gmra.mrb[0].mxu0 %v639
    %v724 = vpop.f32.mrb[0].mxu0
    %v725 = vadd.f32 0.0, %v724
    %v726 = vpop.f32.mrb[0].mxu0
    %727 = vmatprep.mubr.f32.mxu0 0.0
    %728 = vmatmul.mubr.f32.gmra.mrb[0].mxu0 %v642
    %v729 = vpop.f32.mrb[0].mxu0
    %v730 = vadd.f32 0.0, %v729
    %v731 = vpop.f32.mrb[0].mxu0
    %732 = vmatprep.mubr.f32.mxu0 0.0
    %733 = vmatmul.mubr.f32.gmra.mrb[0].mxu0 %v645
    %v734 = vpop.f32.mrb[0].mxu0
    %v735 = vadd.f32 0.0, %v734
    %v736 = vpop.f32.mrb[0].mxu0
    %737 = vmatprep.mubr.f32.mxu0 0.0
    %738 = vmatmul.mubr.f32.gmra.mrb[0].mxu0 %v648
    %v739 = vpop.f32.mrb[0].mxu0
    %v740 = vadd.f32 0.0, %v739
    %v741 = vpop.f32.mrb[0].mxu0
    %742 = vmatprep.mubr.f32.mxu0 0.0
    %743 = vmatmul.mubr.f32.gmra.mrb[0].mxu0 %v651
    %v744 = vpop.f32.mrb[0].mxu0
    %v745 = vadd.f32 0.0, %v744
    %v746 = vpop.f32.mrb[0].mxu0
    %747 = vdwg.mxu0
    %v749 = vsel %vm634, %v572, 0
    %v752 = vsel %vm634, %v573, 0
    %v755 = vsel %vm634, %v574, 0
    %v758 = vsel %vm634, %v575, 0
    %v761 = vsel %vm634, %v576, 0
    %v764 = vsel %vm634, %v577, 0
    %766 = vmatprep.subr.mxu0 0.0
    %767 = vmatpush1.msra.mxu0 %v330
    %768 = vmatprep.subr.mxu0 0.0
    %769 = vmatpush1.msra.mxu0 %v335
    %770 = vmatprep.subr.mxu0 0.0
    %771 = vmatpush1.msra.mxu0 0.0
    %772 = vmatprep.subr.mxu0 0.0
    %773 = vmatpush1.msra.mxu0 0.0
    %774 = vmatprep.subr.mxu0 0.0
    %775 = vmatpush1.msra.mxu0 0.0
    %776 = vmatprep.subr.mxu0 0.0
    %777 = vmatpush1.msra.mxu0 0.0
    %778 = vmatprep.subr.mxu0 0.0
    %779 = vmatpush1.msra.mxu0 0.0
    %780 = vmatprep.subr.mxu0 0.0
    %781 = vmatpush1.msra.mxu0 0.0
    %782 = vmatprep.subr.mxu0 0.0
    %783 = vmatpush1.msra.mxu0 0.0
    %784 = vmatprep.subr.mxu0 0.0
    %785 = vmatpush1.msra.mxu0 0.0
    %786 = vmatprep.subr.mxu0 0.0
    %787 = vmatpush1.msra.mxu0 0.0
    %788 = vmatprep.subr.mxu0 0.0
    %789 = vmatpush1.msra.mxu0 0.0
    %790 = vmatprep.subr.mxu0 0.0
    %791 = vmatpush1.msra.mxu0 0.0
    %792 = vmatprep.subr.mxu0 0.0
    %793 = vmatpush1.msra.mxu0 0.0
    %794 = vmatprep.subr.mxu0 0.0
    %795 = vmatpush1.msra.mxu0 0.0
    %796 = vmatprep.subr.mxu0 0.0
    %797 = vmatpush1.msra.mxu0 0.0
    %798 = vmatprep.subr.mxu0 0.0
    %799 = vmatpush1.msra.mxu0 0.0
    %800 = vmatprep.subr.mxu0 0.0
    %801 = vmatpush1.msra.mxu0 0.0
    %802 = vmatprep.subr.mxu0 0.0
    %803 = vmatpush1.msra.mxu0 0.0
    %804 = vmatprep.subr.mxu0 0.0
    %805 = vmatpush1.msra.mxu0 0.0
    %806 = vmatprep.subr.mxu0 0.0
    %807 = vmatpush1.msra.mxu0 0.0
    %808 = vmatprep.subr.mxu0 0.0
    %809 = vmatpush1.msra.mxu0 0.0
    %810 = vmatprep.subr.mxu0 0.0
    %811 = vmatpush1.msra.mxu0 0.0
    %812 = vmatprep.subr.mxu0 0.0
    %813 = vmatpush1.msra.mxu0 0.0
    %814 = vmatprep.subr.mxu0 0.0
    %815 = vmatpush1.msra.mxu0 0.0
    %816 = vmatprep.subr.mxu0 0.0
    %817 = vmatpush1.msra.mxu0 0.0
    %818 = vmatprep.subr.mxu0 0.0
    %819 = vmatpush1.msra.mxu0 0.0
    %820 = vmatprep.subr.mxu0 0.0
    %821 = vmatpush1.msra.mxu0 0.0
    %822 = vmatprep.subr.mxu0 0.0
    %823 = vmatpush1.msra.mxu0 0.0
    %824 = vmatprep.subr.mxu0 0.0
    %825 = vmatpush1.msra.mxu0 0.0
    %826 = vmatprep.subr.mxu0 0.0
    %827 = vmatpush1.msra.mxu0 0.0
    %828 = vmatprep.subr.mxu0 0.0
    %829 = vmatpush1.msra.mxu0 0.0
    %830 = vmatprep.mubr.f32.mxu0 0.0
    %831 = vmatmul.mubr.f32.gmra.mrb[0].mxu0 %v749
    %v832 = vpop.f32.mrb[0].mxu0
    %v833 = vadd.f32 %v720, %v832
    %v834 = vpop.f32.mrb[0].mxu0
    %835 = vmatprep.mubr.f32.mxu0 0.0
    %836 = vmatmul.mubr.f32.gmra.mrb[0].mxu0 %v752
    %v837 = vpop.f32.mrb[0].mxu0
    %v838 = vadd.f32 %v725, %v837
    %v839 = vpop.f32.mrb[0].mxu0
    %840 = vmatprep.mubr.f32.mxu0 0.0
    %841 = vmatmul.mubr.f32.gmra.mrb[0].mxu0 %v755
    %v842 = vpop.f32.mrb[0].mxu0
    %v843 = vadd.f32 %v730, %v842
    %v844 = vpop.f32.mrb[0].mxu0
    %845 = vmatprep.mubr.f32.mxu0 0.0
    %846 = vmatmul.mubr.f32.gmra.mrb[0].mxu0 %v758
    %v847 = vpop.f32.mrb[0].mxu0
    %v848 = vadd.f32 %v735, %v847
    %v849 = vpop.f32.mrb[0].mxu0
    %850 = vmatprep.mubr.f32.mxu0 0.0
    %851 = vmatmul.mubr.f32.gmra.mrb[0].mxu0 %v761
    %v852 = vpop.f32.mrb[0].mxu0
    %v853 = vadd.f32 %v740, %v852
    %v854 = vpop.f32.mrb[0].mxu0
    %855 = vmatprep.mubr.f32.mxu0 0.0
    %856 = vmatmul.mubr.f32.gmra.mrb[0].mxu0 %v764
    %v857 = vpop.f32.mrb[0].mxu0
    %v858 = vadd.f32 %v745, %v857
    %v859 = vpop.f32.mrb[0].mxu0
    %860 = vdwg.mxu0
    %v861 = vadd.f32 %v833, %v506
    %v862 = vadd.f32 %v838, %v511
    %v863 = vadd.f32 %v843, %v516
    %v864 = vadd.f32 %v848, %v521
    %v865 = vadd.f32 %v853, %v526
    %v866 = vadd.f32 %v858, %v531
    %vm867 = vcmp.gt.f32.partialorder %v861, 0.0
    %vm868 = vcmp.gt.f32.partialorder %v862, 0.0
    %vm869 = vcmp.gt.f32.partialorder %v863, 0.0
    %vm870 = vcmp.gt.f32.partialorder %v864, 0.0
    %vm871 = vcmp.gt.f32.partialorder %v865, 0.0
    %vm872 = vcmp.gt.f32.partialorder %v866, 0.0
    %v873 = vmul.f32 %v861, 0.2
    %v874 = vmul.f32 %v862, 0.2
    %v875 = vmul.f32 %v863, 0.2
    %v876 = vmul.f32 %v864, 0.2
    %v877 = vmul.f32 %v865, 0.2
    %v878 = vmul.f32 %v866, 0.2
    %v879 = vsel %vm867, %v861, %v873
    %v880 = vsel %vm868, %v862, %v874
    %v881 = vsel %vm869, %v863, %v875
    %v882 = vsel %vm870, %v864, %v876
    %v883 = vsel %vm871, %v865, %v877
    %v884 = vsel %vm872, %v866, %v878
    %vm885 = vcmask 392192
    %v887 = vsel %vm885, %v632, 0
    %v890 = vsel %vm885, %v633, 0
    %892 = vmatprep.subr.mxu0 0.0
    %893 = vmatpush1.msra.mxu0 %v572
    %894 = vmatprep.subr.mxu0 0.0
    %895 = vmatpush1.msra.mxu0 %v573
    %896 = vmatprep.subr.mxu0 0.0
    %897 = vmatpush1.msra.mxu0 %v574
    %898 = vmatprep.subr.mxu0 0.0
    %899 = vmatpush1.msra.mxu0 %v575
    %900 = vmatprep.subr.mxu0 0.0
    %901 = vmatpush1.msra.mxu0 %v576
    %902 = vmatprep.subr.mxu0 0.0
    %903 = vmatpush1.msra.mxu0 %v577
    %904 = vmatprep.subr.mxu0 0.0
    %905 = vmatpush1.msra.mxu0 0.0
    %906 = vmatprep.subr.mxu0 0.0
    %907 = vmatpush1.msra.mxu0 0.0
    %908 = vmatprep.subr.mxu0 0.0
    %909 = vmatpush1.msra.mxu0 0.0
    %910 = vmatprep.subr.mxu0 0.0
    %911 = vmatpush1.msra.mxu0 0.0
    %912 = vmatprep.subr.mxu0 0.0
    %913 = vmatpush1.msra.mxu0 0.0
    %914 = vmatprep.subr.mxu0 0.0
    %915 = vmatpush1.msra.mxu0 0.0
    %916 = vmatprep.subr.mxu0 0.0
    %917 = vmatpush1.msra.mxu0 0.0
    %918 = vmatprep.subr.mxu0 0.0
    %919 = vmatpush1.msra.mxu0 0.0
    %920 = vmatprep.subr.mxu0 0.0
    %921 = vmatpush1.msra.mxu0 0.0
    %922 = vmatprep.subr.mxu0 0.0
    %923 = vmatpush1.msra.mxu0 0.0
    %924 = vmatprep.subr.mxu0 0.0
    %925 = vmatpush1.msra.mxu0 0.0
    %926 = vmatprep.subr.mxu0 0.0
    %927 = vmatpush1.msra.mxu0 0.0
    %928 = vmatprep.subr.mxu0 0.0
    %929 = vmatpush1.msra.mxu0 0.0
    %930 = vmatprep.subr.mxu0 0.0
    %931 = vmatpush1.msra.mxu0 0.0
    %932 = vmatprep.subr.mxu0 0.0
    %933 = vmatpush1.msra.mxu0 0.0
    %934 = vmatprep.subr.mxu0 0.0
    %935 = vmatpush1.msra.mxu0 0.0
    %936 = vmatprep.subr.mxu0 0.0
    %937 = vmatpush1.msra.mxu0 0.0
    %938 = vmatprep.subr.mxu0 0.0
    %939 = vmatpush1.msra.mxu0 0.0
    %940 = vmatprep.subr.mxu0 0.0
    %941 = vmatpush1.msra.mxu0 0.0
    %942 = vmatprep.subr.mxu0 0.0
    %943 = vmatpush1.msra.mxu0 0.0
    %944 = vmatprep.subr.mxu0 0.0
    %945 = vmatpush1.msra.mxu0 0.0
    %946 = vmatprep.subr.mxu0 0.0
    %947 = vmatpush1.msra.mxu0 0.0
    %948 = vmatprep.subr.mxu0 0.0
    %949 = vmatpush1.msra.mxu0 0.0
    %950 = vmatprep.subr.mxu0 0.0
    %951 = vmatpush1.msra.mxu0 0.0
    %952 = vmatprep.subr.mxu0 0.0
    %953 = vmatpush1.msra.mxu0 0.0
    %954 = vmatprep.subr.mxu0 0.0
    %955 = vmatpush1.msra.mxu0 0.0
    %956 = vmatprep.mubr.f32.mxu0 0.0
    %957 = vmatmul.mubr.f32.gmra.mrb[0].mxu0 %v887
    %v958 = vpop.f32.mrb[0].mxu0
    %v959 = vadd.f32 0.0, %v958
    %v960 = vpop.f32.mrb[0].mxu0
    %961 = vmatprep.mubr.f32.mxu0 0.0
    %962 = vmatmul.mubr.f32.gmra.mrb[0].mxu0 %v890
    %v963 = vpop.f32.mrb[0].mxu0
    %v964 = vadd.f32 0.0, %v963
    %v965 = vpop.f32.mrb[0].mxu0
    %966 = vdwg.mxu0
    %968 = vset.pattern.permute.xlu0 0
    %969 = vperm.xlu0 %968, %v879
    %v970 = vpop.permute.xlu0 %969
    %973 = vset.pattern.permute.xlu0 0
    %974 = vperm.xlu0 %973, %v880
    %v975 = vpop.permute.xlu0 %974
    %978 = vset.pattern.permute.xlu0 0
    %979 = vperm.xlu0 %978, %v881
    %v980 = vpop.permute.xlu0 %979
    %983 = vset.pattern.permute.xlu0 0
    %984 = vperm.xlu0 %983, %v882
    %v985 = vpop.permute.xlu0 %984
    %988 = vset.pattern.permute.xlu0 0
    %989 = vperm.xlu0 %988, %v883
    %v990 = vpop.permute.xlu0 %989
    %993 = vset.pattern.permute.xlu0 0
    %994 = vperm.xlu0 %993, %v884
    %v995 = vpop.permute.xlu0 %994
    %v997 = vmul.f32 %v572, %v970
    %v998 = vmul.f32 %v573, %v975
    %v999 = vmul.f32 %v574, %v980
    %v1000 = vmul.f32 %v575, %v985
    %v1001 = vmul.f32 %v576, %v990
    %v1002 = vmul.f32 %v577, %v995
    %1003 = vmatprep.subr.mxu0 0.0
    %1004 = vmatpush1.msra.mxu0 %v997
    %1005 = vmatprep.subr.mxu0 0.0
    %1006 = vmatpush1.msra.mxu0 %v998
    %1007 = vmatprep.subr.mxu0 0.0
    %1008 = vmatpush1.msra.mxu0 %v999
    %1009 = vmatprep.subr.mxu0 0.0
    %1010 = vmatpush1.msra.mxu0 %v1000
    %1011 = vmatprep.subr.mxu0 0.0
    %1012 = vmatpush1.msra.mxu0 %v1001
    %1013 = vmatprep.subr.mxu0 0.0
    %1014 = vmatpush1.msra.mxu0 %v1002
    %1015 = vmatprep.subr.mxu0 0.0
    %1016 = vmatpush1.msra.mxu0 0.0
    %1017 = vmatprep.subr.mxu0 0.0
    %1018 = vmatpush1.msra.mxu0 0.0
    %1019 = vmatprep.subr.mxu0 0.0
    %1020 = vmatpush1.msra.mxu0 0.0
    %1021 = vmatprep.subr.mxu0 0.0
    %1022 = vmatpush1.msra.mxu0 0.0
    %1023 = vmatprep.subr.mxu0 0.0
    %1024 = vmatpush1.msra.mxu0 0.0
    %1025 = vmatprep.subr.mxu0 0.0
    %1026 = vmatpush1.msra.mxu0 0.0
    %1027 = vmatprep.subr.mxu0 0.0
    %1028 = vmatpush1.msra.mxu0 0.0
    %1029 = vmatprep.subr.mxu0 0.0
    %1030 = vmatpush1.msra.mxu0 0.0
    %1031 = vmatprep.subr.mxu0 0.0
    %1032 = vmatpush1.msra.mxu0 0.0
    %1033 = vmatprep.subr.mxu0 0.0
    %1034 = vmatpush1.msra.mxu0 0.0
    %1035 = vmatprep.subr.mxu0 0.0
    %1036 = vmatpush1.msra.mxu0 0.0
    %1037 = vmatprep.subr.mxu0 0.0
    %1038 = vmatpush1.msra.mxu0 0.0
    %1039 = vmatprep.subr.mxu0 0.0
    %1040 = vmatpush1.msra.mxu0 0.0
    %1041 = vmatprep.subr.mxu0 0.0
    %1042 = vmatpush1.msra.mxu0 0.0
    %1043 = vmatprep.subr.mxu0 0.0
    %1044 = vmatpush1.msra.mxu0 0.0
    %1045 = vmatprep.subr.mxu0 0.0
    %1046 = vmatpush1.msra.mxu0 0.0
    %1047 = vmatprep.subr.mxu0 0.0
    %1048 = vmatpush1.msra.mxu0 0.0
    %1049 = vmatprep.subr.mxu0 0.0
    %1050 = vmatpush1.msra.mxu0 0.0
    %1051 = vmatprep.subr.mxu0 0.0
    %1052 = vmatpush1.msra.mxu0 0.0
    %1053 = vmatprep.subr.mxu0 0.0
    %1054 = vmatpush1.msra.mxu0 0.0
    %1055 = vmatprep.subr.mxu0 0.0
    %1056 = vmatpush1.msra.mxu0 0.0
    %1057 = vmatprep.subr.mxu0 0.0
    %1058 = vmatpush1.msra.mxu0 0.0
    %1059 = vmatprep.subr.mxu0 0.0
    %1060 = vmatpush1.msra.mxu0 0.0
    %1061 = vmatprep.subr.mxu0 0.0
    %1062 = vmatpush1.msra.mxu0 0.0
    %1063 = vmatprep.subr.mxu0 0.0
    %1064 = vmatpush1.msra.mxu0 0.0
    %1065 = vmatprep.subr.mxu0 0.0
    %1066 = vmatpush1.msra.mxu0 0.0
    %1067 = vmatprep.mubr.f32.mxu0 0.0
    %1068 = vmatmul.mubr.f32.gmra.mrb[0].mxu0 %v887
    %v1069 = vpop.f32.mrb[0].mxu0
    %v1070 = vadd.f32 0.0, %v1069
    %v1071 = vpop.f32.mrb[0].mxu0
    %1072 = vmatprep.mubr.f32.mxu0 0.0
    %1073 = vmatmul.mubr.f32.gmra.mrb[0].mxu0 %v890
    %v1074 = vpop.f32.mrb[0].mxu0
    %v1075 = vadd.f32 0.0, %v1074
    %v1076 = vpop.f32.mrb[0].mxu0
    %1077 = vdwg.mxu0
    %vm1078 = vcmp.gt.f32.partialorder %v959, 0.0
    %vm1079 = vcmp.gt.f32.partialorder %v964, 0.0
    %v1080 = vsel %vm1078, %v1070, -1e+30
    %v1081 = vsel %vm1079, %v1075, -1e+30
    %v1082 = vsel %vm634, %v1080, -inf
    %1083 = vmax.xlane.f32.xlu0 %v1082
    %v1084 = vpop.xlane.xlu0 %1083
    %v1085 = vsel %vm634, %v1081, -inf
    %1086 = vmax.xlane.f32.xlu0 %v1085
    %v1087 = vpop.xlane.xlu0 %1086
    %v1088 = vsub.f32 %v1080, %v1084
    %v1089 = vsub.f32 %v1081, %v1087
    %v1090 = vmul.f32 %v1088, 1.442695
    %v1091 = vpow.pop %v1090
    %v1092 = vmul.f32 %v1089, 1.442695
    %v1093 = vpow.pop %v1092
    %v1094 = vsel %vm634, %v1091, 0.0
    %1095 = vadd.xlane.f32.xlu0 %v1094
    %v1096 = vpop.xlane.xlu0 %1095
    %v1097 = vsel %vm634, %v1093, 0.0
    %1098 = vadd.xlane.f32.xlu0 %v1097
    %v1099 = vpop.xlane.xlu0 %1098
    %v1100 = vrcp.pop %v1096
    %v1101 = vrcp.pop %v1099
    %v1102 = vld [vmem:[%s7] sm:$0x1]
    %v1103 = vlaneseq
    %v1104 = vshrl.u32 %v1103, 7
    %v1105 = vsub.s32 0, %v1104
    %v1106 = vrot.slane %v1102, %v1105
    %v1107 = vmul.f32 %v119, %v1106
    %v1108 = vmul.f32 %v124, %v1106
    %v1110 = vsel %vm634, %v1091, 0
    %v1113 = vsel %vm634, %v1093, 0
    %1115 = vmatprep.subr.mxu0 0.0
    %1116 = vmatpush1.msra.mxu0 %v1107
    %1117 = vmatprep.subr.mxu0 0.0
    %1118 = vmatpush1.msra.mxu0 %v1108
    %1119 = vmatprep.subr.mxu0 0.0
    %1120 = vmatpush1.msra.mxu0 0.0
    %1121 = vmatprep.subr.mxu0 0.0
    %1122 = vmatpush1.msra.mxu0 0.0
    %1123 = vmatprep.subr.mxu0 0.0
    %1124 = vmatpush1.msra.mxu0 0.0
    %1125 = vmatprep.subr.mxu0 0.0
    %1126 = vmatpush1.msra.mxu0 0.0
    %1127 = vmatprep.subr.mxu0 0.0
    %1128 = vmatpush1.msra.mxu0 0.0
    %1129 = vmatprep.subr.mxu0 0.0
    %1130 = vmatpush1.msra.mxu0 0.0
    %1131 = vmatprep.subr.mxu0 0.0
    %1132 = vmatpush1.msra.mxu0 0.0
    %1133 = vmatprep.subr.mxu0 0.0
    %1134 = vmatpush1.msra.mxu0 0.0
    %1135 = vmatprep.subr.mxu0 0.0
    %1136 = vmatpush1.msra.mxu0 0.0
    %1137 = vmatprep.subr.mxu0 0.0
    %1138 = vmatpush1.msra.mxu0 0.0
    %1139 = vmatprep.subr.mxu0 0.0
    %1140 = vmatpush1.msra.mxu0 0.0
    %1141 = vmatprep.subr.mxu0 0.0
    %1142 = vmatpush1.msra.mxu0 0.0
    %1143 = vmatprep.subr.mxu0 0.0
    %1144 = vmatpush1.msra.mxu0 0.0
    %1145 = vmatprep.subr.mxu0 0.0
    %1146 = vmatpush1.msra.mxu0 0.0
    %1147 = vmatprep.subr.mxu0 0.0
    %1148 = vmatpush1.msra.mxu0 0.0
    %1149 = vmatprep.subr.mxu0 0.0
    %1150 = vmatpush1.msra.mxu0 0.0
    %1151 = vmatprep.subr.mxu0 0.0
    %1152 = vmatpush1.msra.mxu0 0.0
    %1153 = vmatprep.subr.mxu0 0.0
    %1154 = vmatpush1.msra.mxu0 0.0
    %1155 = vmatprep.subr.mxu0 0.0
    %1156 = vmatpush1.msra.mxu0 0.0
    %1157 = vmatprep.subr.mxu0 0.0
    %1158 = vmatpush1.msra.mxu0 0.0
    %1159 = vmatprep.subr.mxu0 0.0
    %1160 = vmatpush1.msra.mxu0 0.0
    %1161 = vmatprep.subr.mxu0 0.0
    %1162 = vmatpush1.msra.mxu0 0.0
    %1163 = vmatprep.subr.mxu0 0.0
    %1164 = vmatpush1.msra.mxu0 0.0
    %1165 = vmatprep.subr.mxu0 0.0
    %1166 = vmatpush1.msra.mxu0 0.0
    %1167 = vmatprep.subr.mxu0 0.0
    %1168 = vmatpush1.msra.mxu0 0.0
    %1169 = vmatprep.subr.mxu0 0.0
    %1170 = vmatpush1.msra.mxu0 0.0
    %1171 = vmatprep.subr.mxu0 0.0
    %1172 = vmatpush1.msra.mxu0 0.0
    %1173 = vmatprep.subr.mxu0 0.0
    %1174 = vmatpush1.msra.mxu0 0.0
    %1175 = vmatprep.subr.mxu0 0.0
    %1176 = vmatpush1.msra.mxu0 0.0
    %1177 = vmatprep.subr.mxu0 0.0
    %1178 = vmatpush1.msra.mxu0 0.0
    %1179 = vmatprep.mubr.f32.mxu0 0.0
    %1180 = vmatmul.mubr.f32.gmra.mrb[0].mxu0 %v1110
    %v1181 = vpop.f32.mrb[0].mxu0
    %v1182 = vadd.f32 0.0, %v1181
    %v1183 = vpop.f32.mrb[0].mxu0
    %1184 = vmatprep.mubr.f32.mxu0 0.0
    %1185 = vmatmul.mubr.f32.gmra.mrb[0].mxu0 %v1113
    %v1186 = vpop.f32.mrb[0].mxu0
    %v1187 = vadd.f32 0.0, %v1186
    %v1188 = vpop.f32.mrb[0].mxu0
    %1189 = vdwg.mxu0
    %v1190 = vmul.f32 %v1182, %v1100
    %v1191 = vmul.f32 %v1187, %v1101
    %v1192 = vadd.f32 %v1190, 0.0
    %v1193 = vadd.f32 %v1191, 0.0
    %1194 = vset.pattern.permute.xlu0 1
    %1195 = vperm.xlu0 %1194, %v879
    %v1196 = vpop.permute.xlu0 %1195
    %1198 = vset.pattern.permute.xlu0 1
    %1199 = vperm.xlu0 %1198, %v880
    %v1200 = vpop.permute.xlu0 %1199
    %1202 = vset.pattern.permute.xlu0 1
    %1203 = vperm.xlu0 %1202, %v881
    %v1204 = vpop.permute.xlu0 %1203
    %1206 = vset.pattern.permute.xlu0 1
    %1207 = vperm.xlu0 %1206, %v882
    %v1208 = vpop.permute.xlu0 %1207
    %1210 = vset.pattern.permute.xlu0 1
    %1211 = vperm.xlu0 %1210, %v883
    %v1212 = vpop.permute.xlu0 %1211
    %1214 = vset.pattern.permute.xlu0 1
    %1215 = vperm.xlu0 %1214, %v884
    %v1216 = vpop.permute.xlu0 %1215
    %v1218 = vmul.f32 %v572, %v1196
    %v1219 = vmul.f32 %v573, %v1200
    %v1220 = vmul.f32 %v574, %v1204
    %v1221 = vmul.f32 %v575, %v1208
    %v1222 = vmul.f32 %v576, %v1212
    %v1223 = vmul.f32 %v577, %v1216
    %1224 = vmatprep.subr.mxu0 0.0
    %1225 = vmatpush1.msra.mxu0 %v1218
    %1226 = vmatprep.subr.mxu0 0.0
    %1227 = vmatpush1.msra.mxu0 %v1219
    %1228 = vmatprep.subr.mxu0 0.0
    %1229 = vmatpush1.msra.mxu0 %v1220
    %1230 = vmatprep.subr.mxu0 0.0
    %1231 = vmatpush1.msra.mxu0 %v1221
    %1232 = vmatprep.subr.mxu0 0.0
    %1233 = vmatpush1.msra.mxu0 %v1222
    %1234 = vmatprep.subr.mxu0 0.0
    %1235 = vmatpush1.msra.mxu0 %v1223
    %1236 = vmatprep.subr.mxu0 0.0
    %1237 = vmatpush1.msra.mxu0 0.0
    %1238 = vmatprep.subr.mxu0 0.0
    %1239 = vmatpush1.msra.mxu0 0.0
    %1240 = vmatprep.subr.mxu0 0.0
    %1241 = vmatpush1.msra.mxu0 0.0
    %1242 = vmatprep.subr.mxu0 0.0
    %1243 = vmatpush1.msra.mxu0 0.0
    %1244 = vmatprep.subr.mxu0 0.0
    %1245 = vmatpush1.msra.mxu0 0.0
    %1246 = vmatprep.subr.mxu0 0.0
    %1247 = vmatpush1.msra.mxu0 0.0
    %1248 = vmatprep.subr.mxu0 0.0
    %1249 = vmatpush1.msra.mxu0 0.0
    %1250 = vmatprep.subr.mxu0 0.0
    %1251 = vmatpush1.msra.mxu0 0.0
    %1252 = vmatprep.subr.mxu0 0.0
    %1253 = vmatpush1.msra.mxu0 0.0
    %1254 = vmatprep.subr.mxu0 0.0
    %1255 = vmatpush1.msra.mxu0 0.0
    %1256 = vmatprep.subr.mxu0 0.0
    %1257 = vmatpush1.msra.mxu0 0.0
    %1258 = vmatprep.subr.mxu0 0.0
    %1259 = vmatpush1.msra.mxu0 0.0
    %1260 = vmatprep.subr.mxu0 0.0
    %1261 = vmatpush1.msra.mxu0 0.0
    %1262 = vmatprep.subr.mxu0 0.0
    %1263 = vmatpush1.msra.mxu0 0.0
    %1264 = vmatprep.subr.mxu0 0.0
    %1265 = vmatpush1.msra.mxu0 0.0
    %1266 = vmatprep.subr.mxu0 0.0
    %1267 = vmatpush1.msra.mxu0 0.0
    %1268 = vmatprep.subr.mxu0 0.0
    %1269 = vmatpush1.msra.mxu0 0.0
    %1270 = vmatprep.subr.mxu0 0.0
    %1271 = vmatpush1.msra.mxu0 0.0
    %1272 = vmatprep.subr.mxu0 0.0
    %1273 = vmatpush1.msra.mxu0 0.0
    %1274 = vmatprep.subr.mxu0 0.0
    %1275 = vmatpush1.msra.mxu0 0.0
    %1276 = vmatprep.subr.mxu0 0.0
    %1277 = vmatpush1.msra.mxu0 0.0
    %1278 = vmatprep.subr.mxu0 0.0
    %1279 = vmatpush1.msra.mxu0 0.0
    %1280 = vmatprep.subr.mxu0 0.0
    %1281 = vmatpush1.msra.mxu0 0.0
    %1282 = vmatprep.subr.mxu0 0.0
    %1283 = vmatpush1.msra.mxu0 0.0
    %1284 = vmatprep.subr.mxu0 0.0
    %1285 = vmatpush1.msra.mxu0 0.0
    %1286 = vmatprep.subr.mxu0 0.0
    %1287 = vmatpush1.msra.mxu0 0.0
    %1288 = vmatprep.mubr.f32.mxu0 0.0
    %1289 = vmatmul.mubr.f32.gmra.mrb[0].mxu0 %v887
    %v1290 = vpop.f32.mrb[0].mxu0
    %v1291 = vadd.f32 0.0, %v1290
    %v1292 = vpop.f32.mrb[0].mxu0
    %1293 = vmatprep.mubr.f32.mxu0 0.0
    %1294 = vmatmul.mubr.f32.gmra.mrb[0].mxu0 %v890
    %v1295 = vpop.f32.mrb[0].mxu0
    %v1296 = vadd.f32 0.0, %v1295
    %v1297 = vpop.f32.mrb[0].mxu0
    %1298 = vdwg.mxu0
    %v1299 = vsel %vm1078, %v1291, -1e+30
    %v1300 = vsel %vm1079, %v1296, -1e+30
    %v1301 = vsel %vm634, %v1299, -inf
    %1302 = vmax.xlane.f32.xlu0 %v1301
    %v1303 = vpop.xlane.xlu0 %1302
    %v1304 = vsel %vm634, %v1300, -inf
    %1305 = vmax.xlane.f32.xlu0 %v1304
    %v1306 = vpop.xlane.xlu0 %1305
    %v1307 = vsub.f32 %v1299, %v1303
    %v1308 = vsub.f32 %v1300, %v1306
    %v1309 = vmul.f32 %v1307, 1.442695
    %v1310 = vpow.pop %v1309
    %v1311 = vmul.f32 %v1308, 1.442695
    %v1312 = vpow.pop %v1311
    %v1313 = vsel %vm634, %v1310, 0.0
    %1314 = vadd.xlane.f32.xlu0 %v1313
    %v1315 = vpop.xlane.xlu0 %1314
    %v1316 = vsel %vm634, %v1312, 0.0
    %1317 = vadd.xlane.f32.xlu0 %v1316
    %v1318 = vpop.xlane.xlu0 %1317
    %v1319 = vrcp.pop %v1315
    %v1320 = vrcp.pop %v1318
    %v1321 = vld [vmem:[%s7 + $0x1] sm:$0x1]
    %v1322 = vlaneseq
    %v1323 = vshrl.u32 %v1322, 7
    %v1324 = vsub.s32 0, %v1323
    %v1325 = vrot.slane %v1321, %v1324
    %v1326 = vmul.f32 %v119, %v1325
    %v1327 = vmul.f32 %v124, %v1325
    %v1329 = vsel %vm634, %v1310, 0
    %v1332 = vsel %vm634, %v1312, 0
    %1334 = vmatprep.subr.mxu0 0.0
    %1335 = vmatpush1.msra.mxu0 %v1326
    %1336 = vmatprep.subr.mxu0 0.0
    %1337 = vmatpush1.msra.mxu0 %v1327
    %1338 = vmatprep.subr.mxu0 0.0
    %1339 = vmatpush1.msra.mxu0 0.0
    %1340 = vmatprep.subr.mxu0 0.0
    %1341 = vmatpush1.msra.mxu0 0.0
    %1342 = vmatprep.subr.mxu0 0.0
    %1343 = vmatpush1.msra.mxu0 0.0
    %1344 = vmatprep.subr.mxu0 0.0
    %1345 = vmatpush1.msra.mxu0 0.0
    %1346 = vmatprep.subr.mxu0 0.0
    %1347 = vmatpush1.msra.mxu0 0.0
    %1348 = vmatprep.subr.mxu0 0.0
    %1349 = vmatpush1.msra.mxu0 0.0
    %1350 = vmatprep.subr.mxu0 0.0
    %1351 = vmatpush1.msra.mxu0 0.0
    %1352 = vmatprep.subr.mxu0 0.0
    %1353 = vmatpush1.msra.mxu0 0.0
    %1354 = vmatprep.subr.mxu0 0.0
    %1355 = vmatpush1.msra.mxu0 0.0
    %1356 = vmatprep.subr.mxu0 0.0
    %1357 = vmatpush1.msra.mxu0 0.0
    %1358 = vmatprep.subr.mxu0 0.0
    %1359 = vmatpush1.msra.mxu0 0.0
    %1360 = vmatprep.subr.mxu0 0.0
    %1361 = vmatpush1.msra.mxu0 0.0
    %1362 = vmatprep.subr.mxu0 0.0
    %1363 = vmatpush1.msra.mxu0 0.0
    %1364 = vmatprep.subr.mxu0 0.0
    %1365 = vmatpush1.msra.mxu0 0.0
    %1366 = vmatprep.subr.mxu0 0.0
    %1367 = vmatpush1.msra.mxu0 0.0
    %1368 = vmatprep.subr.mxu0 0.0
    %1369 = vmatpush1.msra.mxu0 0.0
    %1370 = vmatprep.subr.mxu0 0.0
    %1371 = vmatpush1.msra.mxu0 0.0
    %1372 = vmatprep.subr.mxu0 0.0
    %1373 = vmatpush1.msra.mxu0 0.0
    %1374 = vmatprep.subr.mxu0 0.0
    %1375 = vmatpush1.msra.mxu0 0.0
    %1376 = vmatprep.subr.mxu0 0.0
    %1377 = vmatpush1.msra.mxu0 0.0
    %1378 = vmatprep.subr.mxu0 0.0
    %1379 = vmatpush1.msra.mxu0 0.0
    %1380 = vmatprep.subr.mxu0 0.0
    %1381 = vmatpush1.msra.mxu0 0.0
    %1382 = vmatprep.subr.mxu0 0.0
    %1383 = vmatpush1.msra.mxu0 0.0
    %1384 = vmatprep.subr.mxu0 0.0
    %1385 = vmatpush1.msra.mxu0 0.0
    %1386 = vmatprep.subr.mxu0 0.0
    %1387 = vmatpush1.msra.mxu0 0.0
    %1388 = vmatprep.subr.mxu0 0.0
    %1389 = vmatpush1.msra.mxu0 0.0
    %1390 = vmatprep.subr.mxu0 0.0
    %1391 = vmatpush1.msra.mxu0 0.0
    %1392 = vmatprep.subr.mxu0 0.0
    %1393 = vmatpush1.msra.mxu0 0.0
    %1394 = vmatprep.subr.mxu0 0.0
    %1395 = vmatpush1.msra.mxu0 0.0
    %1396 = vmatprep.subr.mxu0 0.0
    %1397 = vmatpush1.msra.mxu0 0.0
    %1398 = vmatprep.mubr.f32.mxu0 0.0
    %1399 = vmatmul.mubr.f32.gmra.mrb[0].mxu0 %v1329
    %v1400 = vpop.f32.mrb[0].mxu0
    %v1401 = vadd.f32 0.0, %v1400
    %v1402 = vpop.f32.mrb[0].mxu0
    %1403 = vmatprep.mubr.f32.mxu0 0.0
    %1404 = vmatmul.mubr.f32.gmra.mrb[0].mxu0 %v1332
    %v1405 = vpop.f32.mrb[0].mxu0
    %v1406 = vadd.f32 0.0, %v1405
    %v1407 = vpop.f32.mrb[0].mxu0
    %1408 = vdwg.mxu0
    %v1409 = vmul.f32 %v1401, %v1319
    %v1410 = vmul.f32 %v1406, %v1320
    %v1411 = vadd.f32 %v1192, %v1409
    %v1412 = vadd.f32 %v1193, %v1410
    %1413 = vset.pattern.permute.xlu0 2
    %1414 = vperm.xlu0 %1413, %v879
    %v1415 = vpop.permute.xlu0 %1414
    %1417 = vset.pattern.permute.xlu0 2
    %1418 = vperm.xlu0 %1417, %v880
    %v1419 = vpop.permute.xlu0 %1418
    %1421 = vset.pattern.permute.xlu0 2
    %1422 = vperm.xlu0 %1421, %v881
    %v1423 = vpop.permute.xlu0 %1422
    %1425 = vset.pattern.permute.xlu0 2
    %1426 = vperm.xlu0 %1425, %v882
    %v1427 = vpop.permute.xlu0 %1426
    %1429 = vset.pattern.permute.xlu0 2
    %1430 = vperm.xlu0 %1429, %v883
    %v1431 = vpop.permute.xlu0 %1430
    %1433 = vset.pattern.permute.xlu0 2
    %1434 = vperm.xlu0 %1433, %v884
    %v1435 = vpop.permute.xlu0 %1434
    %v1437 = vmul.f32 %v572, %v1415
    %v1438 = vmul.f32 %v573, %v1419
    %v1439 = vmul.f32 %v574, %v1423
    %v1440 = vmul.f32 %v575, %v1427
    %v1441 = vmul.f32 %v576, %v1431
    %v1442 = vmul.f32 %v577, %v1435
    %1443 = vmatprep.subr.mxu0 0.0
    %1444 = vmatpush1.msra.mxu0 %v1437
    %1445 = vmatprep.subr.mxu0 0.0
    %1446 = vmatpush1.msra.mxu0 %v1438
    %1447 = vmatprep.subr.mxu0 0.0
    %1448 = vmatpush1.msra.mxu0 %v1439
    %1449 = vmatprep.subr.mxu0 0.0
    %1450 = vmatpush1.msra.mxu0 %v1440
    %1451 = vmatprep.subr.mxu0 0.0
    %1452 = vmatpush1.msra.mxu0 %v1441
    %1453 = vmatprep.subr.mxu0 0.0
    %1454 = vmatpush1.msra.mxu0 %v1442
    %1455 = vmatprep.subr.mxu0 0.0
    %1456 = vmatpush1.msra.mxu0 0.0
    %1457 = vmatprep.subr.mxu0 0.0
    %1458 = vmatpush1.msra.mxu0 0.0
    %1459 = vmatprep.subr.mxu0 0.0
    %1460 = vmatpush1.msra.mxu0 0.0
    %1461 = vmatprep.subr.mxu0 0.0
    %1462 = vmatpush1.msra.mxu0 0.0
    %1463 = vmatprep.subr.mxu0 0.0
    %1464 = vmatpush1.msra.mxu0 0.0
    %1465 = vmatprep.subr.mxu0 0.0
    %1466 = vmatpush1.msra.mxu0 0.0
    %1467 = vmatprep.subr.mxu0 0.0
    %1468 = vmatpush1.msra.mxu0 0.0
    %1469 = vmatprep.subr.mxu0 0.0
    %1470 = vmatpush1.msra.mxu0 0.0
    %1471 = vmatprep.subr.mxu0 0.0
    %1472 = vmatpush1.msra.mxu0 0.0
    %1473 = vmatprep.subr.mxu0 0.0
    %1474 = vmatpush1.msra.mxu0 0.0
    %1475 = vmatprep.subr.mxu0 0.0
    %1476 = vmatpush1.msra.mxu0 0.0
    %1477 = vmatprep.subr.mxu0 0.0
    %1478 = vmatpush1.msra.mxu0 0.0
    %1479 = vmatprep.subr.mxu0 0.0
    %1480 = vmatpush1.msra.mxu0 0.0
    %1481 = vmatprep.subr.mxu0 0.0
    %1482 = vmatpush1.msra.mxu0 0.0
    %1483 = vmatprep.subr.mxu0 0.0
    %1484 = vmatpush1.msra.mxu0 0.0
    %1485 = vmatprep.subr.mxu0 0.0
    %1486 = vmatpush1.msra.mxu0 0.0
    %1487 = vmatprep.subr.mxu0 0.0
    %1488 = vmatpush1.msra.mxu0 0.0
    %1489 = vmatprep.subr.mxu0 0.0
    %1490 = vmatpush1.msra.mxu0 0.0
    %1491 = vmatprep.subr.mxu0 0.0
    %1492 = vmatpush1.msra.mxu0 0.0
    %1493 = vmatprep.subr.mxu0 0.0
    %1494 = vmatpush1.msra.mxu0 0.0
    %1495 = vmatprep.subr.mxu0 0.0
    %1496 = vmatpush1.msra.mxu0 0.0
    %1497 = vmatprep.subr.mxu0 0.0
    %1498 = vmatpush1.msra.mxu0 0.0
    %1499 = vmatprep.subr.mxu0 0.0
    %1500 = vmatpush1.msra.mxu0 0.0
    %1501 = vmatprep.subr.mxu0 0.0
    %1502 = vmatpush1.msra.mxu0 0.0
    %1503 = vmatprep.subr.mxu0 0.0
    %1504 = vmatpush1.msra.mxu0 0.0
    %1505 = vmatprep.subr.mxu0 0.0
    %1506 = vmatpush1.msra.mxu0 0.0
    %1507 = vmatprep.mubr.f32.mxu0 0.0
    %1508 = vmatmul.mubr.f32.gmra.mrb[0].mxu0 %v887
    %v1509 = vpop.f32.mrb[0].mxu0
    %v1510 = vadd.f32 0.0, %v1509
    %v1511 = vpop.f32.mrb[0].mxu0
    %1512 = vmatprep.mubr.f32.mxu0 0.0
    %1513 = vmatmul.mubr.f32.gmra.mrb[0].mxu0 %v890
    %v1514 = vpop.f32.mrb[0].mxu0
    %v1515 = vadd.f32 0.0, %v1514
    %v1516 = vpop.f32.mrb[0].mxu0
    %1517 = vdwg.mxu0
    %v1518 = vsel %vm1078, %v1510, -1e+30
    %v1519 = vsel %vm1079, %v1515, -1e+30
    %v1520 = vsel %vm634, %v1518, -inf
    %1521 = vmax.xlane.f32.xlu0 %v1520
    %v1522 = vpop.xlane.xlu0 %1521
    %v1523 = vsel %vm634, %v1519, -inf
    %1524 = vmax.xlane.f32.xlu0 %v1523
    %v1525 = vpop.xlane.xlu0 %1524
    %v1526 = vsub.f32 %v1518, %v1522
    %v1527 = vsub.f32 %v1519, %v1525
    %v1528 = vmul.f32 %v1526, 1.442695
    %v1529 = vpow.pop %v1528
    %v1530 = vmul.f32 %v1527, 1.442695
    %v1531 = vpow.pop %v1530
    %v1532 = vsel %vm634, %v1529, 0.0
    %1533 = vadd.xlane.f32.xlu0 %v1532
    %v1534 = vpop.xlane.xlu0 %1533
    %v1535 = vsel %vm634, %v1531, 0.0
    %1536 = vadd.xlane.f32.xlu0 %v1535
    %v1537 = vpop.xlane.xlu0 %1536
    %v1538 = vrcp.pop %v1534
    %v1539 = vrcp.pop %v1537
    %v1540 = vld [vmem:[%s7 + $0x2] sm:$0x1]
    %v1541 = vlaneseq
    %v1542 = vshrl.u32 %v1541, 7
    %v1543 = vsub.s32 0, %v1542
    %v1544 = vrot.slane %v1540, %v1543
    %v1545 = vmul.f32 %v119, %v1544
    %v1546 = vmul.f32 %v124, %v1544
    %v1548 = vsel %vm634, %v1529, 0
    %v1551 = vsel %vm634, %v1531, 0
    %1553 = vmatprep.subr.mxu0 0.0
    %1554 = vmatpush1.msra.mxu0 %v1545
    %1555 = vmatprep.subr.mxu0 0.0
    %1556 = vmatpush1.msra.mxu0 %v1546
    %1557 = vmatprep.subr.mxu0 0.0
    %1558 = vmatpush1.msra.mxu0 0.0
    %1559 = vmatprep.subr.mxu0 0.0
    %1560 = vmatpush1.msra.mxu0 0.0
    %1561 = vmatprep.subr.mxu0 0.0
    %1562 = vmatpush1.msra.mxu0 0.0
    %1563 = vmatprep.subr.mxu0 0.0
    %1564 = vmatpush1.msra.mxu0 0.0
    %1565 = vmatprep.subr.mxu0 0.0
    %1566 = vmatpush1.msra.mxu0 0.0
    %1567 = vmatprep.subr.mxu0 0.0
    %1568 = vmatpush1.msra.mxu0 0.0
    %1569 = vmatprep.subr.mxu0 0.0
    %1570 = vmatpush1.msra.mxu0 0.0
    %1571 = vmatprep.subr.mxu0 0.0
    %1572 = vmatpush1.msra.mxu0 0.0
    %1573 = vmatprep.subr.mxu0 0.0
    %1574 = vmatpush1.msra.mxu0 0.0
    %1575 = vmatprep.subr.mxu0 0.0
    %1576 = vmatpush1.msra.mxu0 0.0
    %1577 = vmatprep.subr.mxu0 0.0
    %1578 = vmatpush1.msra.mxu0 0.0
    %1579 = vmatprep.subr.mxu0 0.0
    %1580 = vmatpush1.msra.mxu0 0.0
    %1581 = vmatprep.subr.mxu0 0.0
    %1582 = vmatpush1.msra.mxu0 0.0
    %1583 = vmatprep.subr.mxu0 0.0
    %1584 = vmatpush1.msra.mxu0 0.0
    %1585 = vmatprep.subr.mxu0 0.0
    %1586 = vmatpush1.msra.mxu0 0.0
    %1587 = vmatprep.subr.mxu0 0.0
    %1588 = vmatpush1.msra.mxu0 0.0
    %1589 = vmatprep.subr.mxu0 0.0
    %1590 = vmatpush1.msra.mxu0 0.0
    %1591 = vmatprep.subr.mxu0 0.0
    %1592 = vmatpush1.msra.mxu0 0.0
    %1593 = vmatprep.subr.mxu0 0.0
    %1594 = vmatpush1.msra.mxu0 0.0
    %1595 = vmatprep.subr.mxu0 0.0
    %1596 = vmatpush1.msra.mxu0 0.0
    %1597 = vmatprep.subr.mxu0 0.0
    %1598 = vmatpush1.msra.mxu0 0.0
    %1599 = vmatprep.subr.mxu0 0.0
    %1600 = vmatpush1.msra.mxu0 0.0
    %1601 = vmatprep.subr.mxu0 0.0
    %1602 = vmatpush1.msra.mxu0 0.0
    %1603 = vmatprep.subr.mxu0 0.0
    %1604 = vmatpush1.msra.mxu0 0.0
    %1605 = vmatprep.subr.mxu0 0.0
    %1606 = vmatpush1.msra.mxu0 0.0
    %1607 = vmatprep.subr.mxu0 0.0
    %1608 = vmatpush1.msra.mxu0 0.0
    %1609 = vmatprep.subr.mxu0 0.0
    %1610 = vmatpush1.msra.mxu0 0.0
    %1611 = vmatprep.subr.mxu0 0.0
    %1612 = vmatpush1.msra.mxu0 0.0
    %1613 = vmatprep.subr.mxu0 0.0
    %1614 = vmatpush1.msra.mxu0 0.0
    %1615 = vmatprep.subr.mxu0 0.0
    %1616 = vmatpush1.msra.mxu0 0.0
    %1617 = vmatprep.mubr.f32.mxu0 0.0
    %1618 = vmatmul.mubr.f32.gmra.mrb[0].mxu0 %v1548
    %v1619 = vpop.f32.mrb[0].mxu0
    %v1620 = vadd.f32 0.0, %v1619
    %v1621 = vpop.f32.mrb[0].mxu0
    %1622 = vmatprep.mubr.f32.mxu0 0.0
    %1623 = vmatmul.mubr.f32.gmra.mrb[0].mxu0 %v1551
    %v1624 = vpop.f32.mrb[0].mxu0
    %v1625 = vadd.f32 0.0, %v1624
    %v1626 = vpop.f32.mrb[0].mxu0
    %1627 = vdwg.mxu0
    %v1628 = vmul.f32 %v1620, %v1538
    %v1629 = vmul.f32 %v1625, %v1539
    %v1630 = vadd.f32 %v1411, %v1628
    %v1631 = vadd.f32 %v1412, %v1629
    %1632 = vset.pattern.permute.xlu0 3
    %1633 = vperm.xlu0 %1632, %v879
    %v1634 = vpop.permute.xlu0 %1633
    %1636 = vset.pattern.permute.xlu0 3
    %1637 = vperm.xlu0 %1636, %v880
    %v1638 = vpop.permute.xlu0 %1637
    %1640 = vset.pattern.permute.xlu0 3
    %1641 = vperm.xlu0 %1640, %v881
    %v1642 = vpop.permute.xlu0 %1641
    %1644 = vset.pattern.permute.xlu0 3
    %1645 = vperm.xlu0 %1644, %v882
    %v1646 = vpop.permute.xlu0 %1645
    %1648 = vset.pattern.permute.xlu0 3
    %1649 = vperm.xlu0 %1648, %v883
    %v1650 = vpop.permute.xlu0 %1649
    %1652 = vset.pattern.permute.xlu0 3
    %1653 = vperm.xlu0 %1652, %v884
    %v1654 = vpop.permute.xlu0 %1653
    %v1656 = vmul.f32 %v572, %v1634
    %v1657 = vmul.f32 %v573, %v1638
    %v1658 = vmul.f32 %v574, %v1642
    %v1659 = vmul.f32 %v575, %v1646
    %v1660 = vmul.f32 %v576, %v1650
    %v1661 = vmul.f32 %v577, %v1654
    %1662 = vmatprep.subr.mxu0 0.0
    %1663 = vmatpush1.msra.mxu0 %v1656
    %1664 = vmatprep.subr.mxu0 0.0
    %1665 = vmatpush1.msra.mxu0 %v1657
    %1666 = vmatprep.subr.mxu0 0.0
    %1667 = vmatpush1.msra.mxu0 %v1658
    %1668 = vmatprep.subr.mxu0 0.0
    %1669 = vmatpush1.msra.mxu0 %v1659
    %1670 = vmatprep.subr.mxu0 0.0
    %1671 = vmatpush1.msra.mxu0 %v1660
    %1672 = vmatprep.subr.mxu0 0.0
    %1673 = vmatpush1.msra.mxu0 %v1661
    %1674 = vmatprep.subr.mxu0 0.0
    %1675 = vmatpush1.msra.mxu0 0.0
    %1676 = vmatprep.subr.mxu0 0.0
    %1677 = vmatpush1.msra.mxu0 0.0
    %1678 = vmatprep.subr.mxu0 0.0
    %1679 = vmatpush1.msra.mxu0 0.0
    %1680 = vmatprep.subr.mxu0 0.0
    %1681 = vmatpush1.msra.mxu0 0.0
    %1682 = vmatprep.subr.mxu0 0.0
    %1683 = vmatpush1.msra.mxu0 0.0
    %1684 = vmatprep.subr.mxu0 0.0
    %1685 = vmatpush1.msra.mxu0 0.0
    %1686 = vmatprep.subr.mxu0 0.0
    %1687 = vmatpush1.msra.mxu0 0.0
    %1688 = vmatprep.subr.mxu0 0.0
    %1689 = vmatpush1.msra.mxu0 0.0
    %1690 = vmatprep.subr.mxu0 0.0
    %1691 = vmatpush1.msra.mxu0 0.0
    %1692 = vmatprep.subr.mxu0 0.0
    %1693 = vmatpush1.msra.mxu0 0.0
    %1694 = vmatprep.subr.mxu0 0.0
    %1695 = vmatpush1.msra.mxu0 0.0
    %1696 = vmatprep.subr.mxu0 0.0
    %1697 = vmatpush1.msra.mxu0 0.0
    %1698 = vmatprep.subr.mxu0 0.0
    %1699 = vmatpush1.msra.mxu0 0.0
    %1700 = vmatprep.subr.mxu0 0.0
    %1701 = vmatpush1.msra.mxu0 0.0
    %1702 = vmatprep.subr.mxu0 0.0
    %1703 = vmatpush1.msra.mxu0 0.0
    %1704 = vmatprep.subr.mxu0 0.0
    %1705 = vmatpush1.msra.mxu0 0.0
    %1706 = vmatprep.subr.mxu0 0.0
    %1707 = vmatpush1.msra.mxu0 0.0
    %1708 = vmatprep.subr.mxu0 0.0
    %1709 = vmatpush1.msra.mxu0 0.0
    %1710 = vmatprep.subr.mxu0 0.0
    %1711 = vmatpush1.msra.mxu0 0.0
    %1712 = vmatprep.subr.mxu0 0.0
    %1713 = vmatpush1.msra.mxu0 0.0
    %1714 = vmatprep.subr.mxu0 0.0
    %1715 = vmatpush1.msra.mxu0 0.0
    %1716 = vmatprep.subr.mxu0 0.0
    %1717 = vmatpush1.msra.mxu0 0.0
    %1718 = vmatprep.subr.mxu0 0.0
    %1719 = vmatpush1.msra.mxu0 0.0
    %1720 = vmatprep.subr.mxu0 0.0
    %1721 = vmatpush1.msra.mxu0 0.0
    %1722 = vmatprep.subr.mxu0 0.0
    %1723 = vmatpush1.msra.mxu0 0.0
    %1724 = vmatprep.subr.mxu0 0.0
    %1725 = vmatpush1.msra.mxu0 0.0
    %1726 = vmatprep.mubr.f32.mxu0 0.0
    %1727 = vmatmul.mubr.f32.gmra.mrb[0].mxu0 %v887
    %v1728 = vpop.f32.mrb[0].mxu0
    %v1729 = vadd.f32 0.0, %v1728
    %v1730 = vpop.f32.mrb[0].mxu0
    %1731 = vmatprep.mubr.f32.mxu0 0.0
    %1732 = vmatmul.mubr.f32.gmra.mrb[0].mxu0 %v890
    %v1733 = vpop.f32.mrb[0].mxu0
    %v1734 = vadd.f32 0.0, %v1733
    %v1735 = vpop.f32.mrb[0].mxu0
    %1736 = vdwg.mxu0
    %v1737 = vsel %vm1078, %v1729, -1e+30
    %v1738 = vsel %vm1079, %v1734, -1e+30
    %v1739 = vsel %vm634, %v1737, -inf
    %1740 = vmax.xlane.f32.xlu0 %v1739
    %v1741 = vpop.xlane.xlu0 %1740
    %v1742 = vsel %vm634, %v1738, -inf
    %1743 = vmax.xlane.f32.xlu0 %v1742
    %v1744 = vpop.xlane.xlu0 %1743
    %v1745 = vsub.f32 %v1737, %v1741
    %v1746 = vsub.f32 %v1738, %v1744
    %v1747 = vmul.f32 %v1745, 1.442695
    %v1748 = vpow.pop %v1747
    %v1749 = vmul.f32 %v1746, 1.442695
    %v1750 = vpow.pop %v1749
    %v1751 = vsel %vm634, %v1748, 0.0
    %1752 = vadd.xlane.f32.xlu0 %v1751
    %v1753 = vpop.xlane.xlu0 %1752
    %v1754 = vsel %vm634, %v1750, 0.0
    %1755 = vadd.xlane.f32.xlu0 %v1754
    %v1756 = vpop.xlane.xlu0 %1755
    %v1757 = vrcp.pop %v1753
    %v1758 = vrcp.pop %v1756
    %v1759 = vld [vmem:[%s7 + $0x3] sm:$0x1]
    %v1760 = vlaneseq
    %v1761 = vshrl.u32 %v1760, 7
    %v1762 = vsub.s32 0, %v1761
    %v1763 = vrot.slane %v1759, %v1762
    %v1764 = vmul.f32 %v119, %v1763
    %v1765 = vmul.f32 %v124, %v1763
    %v1767 = vsel %vm634, %v1748, 0
    %v1770 = vsel %vm634, %v1750, 0
    %1772 = vmatprep.subr.mxu0 0.0
    %1773 = vmatpush1.msra.mxu0 %v1764
    %1774 = vmatprep.subr.mxu0 0.0
    %1775 = vmatpush1.msra.mxu0 %v1765
    %1776 = vmatprep.subr.mxu0 0.0
    %1777 = vmatpush1.msra.mxu0 0.0
    %1778 = vmatprep.subr.mxu0 0.0
    %1779 = vmatpush1.msra.mxu0 0.0
    %1780 = vmatprep.subr.mxu0 0.0
    %1781 = vmatpush1.msra.mxu0 0.0
    %1782 = vmatprep.subr.mxu0 0.0
    %1783 = vmatpush1.msra.mxu0 0.0
    %1784 = vmatprep.subr.mxu0 0.0
    %1785 = vmatpush1.msra.mxu0 0.0
    %1786 = vmatprep.subr.mxu0 0.0
    %1787 = vmatpush1.msra.mxu0 0.0
    %1788 = vmatprep.subr.mxu0 0.0
    %1789 = vmatpush1.msra.mxu0 0.0
    %1790 = vmatprep.subr.mxu0 0.0
    %1791 = vmatpush1.msra.mxu0 0.0
    %1792 = vmatprep.subr.mxu0 0.0
    %1793 = vmatpush1.msra.mxu0 0.0
    %1794 = vmatprep.subr.mxu0 0.0
    %1795 = vmatpush1.msra.mxu0 0.0
    %1796 = vmatprep.subr.mxu0 0.0
    %1797 = vmatpush1.msra.mxu0 0.0
    %1798 = vmatprep.subr.mxu0 0.0
    %1799 = vmatpush1.msra.mxu0 0.0
    %1800 = vmatprep.subr.mxu0 0.0
    %1801 = vmatpush1.msra.mxu0 0.0
    %1802 = vmatprep.subr.mxu0 0.0
    %1803 = vmatpush1.msra.mxu0 0.0
    %1804 = vmatprep.subr.mxu0 0.0
    %1805 = vmatpush1.msra.mxu0 0.0
    %1806 = vmatprep.subr.mxu0 0.0
    %1807 = vmatpush1.msra.mxu0 0.0
    %1808 = vmatprep.subr.mxu0 0.0
    %1809 = vmatpush1.msra.mxu0 0.0
    %1810 = vmatprep.subr.mxu0 0.0
    %1811 = vmatpush1.msra.mxu0 0.0
    %1812 = vmatprep.subr.mxu0 0.0
    %1813 = vmatpush1.msra.mxu0 0.0
    %1814 = vmatprep.subr.mxu0 0.0
    %1815 = vmatpush1.msra.mxu0 0.0
    %1816 = vmatprep.subr.mxu0 0.0
    %1817 = vmatpush1.msra.mxu0 0.0
    %1818 = vmatprep.subr.mxu0 0.0
    %1819 = vmatpush1.msra.mxu0 0.0
    %1820 = vmatprep.subr.mxu0 0.0
    %1821 = vmatpush1.msra.mxu0 0.0
    %1822 = vmatprep.subr.mxu0 0.0
    %1823 = vmatpush1.msra.mxu0 0.0
    %1824 = vmatprep.subr.mxu0 0.0
    %1825 = vmatpush1.msra.mxu0 0.0
    %1826 = vmatprep.subr.mxu0 0.0
    %1827 = vmatpush1.msra.mxu0 0.0
    %1828 = vmatprep.subr.mxu0 0.0
    %1829 = vmatpush1.msra.mxu0 0.0
    %1830 = vmatprep.subr.mxu0 0.0
    %1831 = vmatpush1.msra.mxu0 0.0
    %1832 = vmatprep.subr.mxu0 0.0
    %1833 = vmatpush1.msra.mxu0 0.0
    %1834 = vmatprep.subr.mxu0 0.0
    %1835 = vmatpush1.msra.mxu0 0.0
    %1836 = vmatprep.mubr.f32.mxu0 0.0
    %1837 = vmatmul.mubr.f32.gmra.mrb[0].mxu0 %v1767
    %v1838 = vpop.f32.mrb[0].mxu0
    %v1839 = vadd.f32 0.0, %v1838
    %v1840 = vpop.f32.mrb[0].mxu0
    %1841 = vmatprep.mubr.f32.mxu0 0.0
    %1842 = vmatmul.mubr.f32.gmra.mrb[0].mxu0 %v1770
    %v1843 = vpop.f32.mrb[0].mxu0
    %v1844 = vadd.f32 0.0, %v1843
    %v1845 = vpop.f32.mrb[0].mxu0
    %1846 = vdwg.mxu0
    %v1847 = vmul.f32 %v1839, %v1757
    %v1848 = vmul.f32 %v1844, %v1758
    %v1849 = vadd.f32 %v1630, %v1847
    %v1850 = vadd.f32 %v1631, %v1848
    %v1851 = vld [vmem:[%s11] sm:$0x1]
    %v1853 = vlaneseq
    %v1854 = vshrl.u32 %v1853, 7
    %v1855 = vsub.s32 0, %v1854
    %v1856 = vrot.slane %v1851, %v1855
    %v1858 = vadd.f32 %v1849, %v1856
    %v1859 = vadd.f32 %v1850, %v1856
    %1860 = vst.msk [vmem:[#allocation2] sm:$0xff] %vm256, %v1858
    %1861 = vst.msk [vmem:[#allocation2 + $0x8] sm:$0xff] %vm256, %v1859
    // Predicated region
    $region50: #{tpu_custom_call.1} parent=1 // pred_check
      _
    $region51: #{tpu_custom_call.1} parent=1 // pred_check_branch
      %1863 = sbr.rel (0) target = $region53
    $region52: #{tpu_custom_call.1} parent=1 // pred_region
      %s1865 = ssub.s32 256, 256
      %1866 = vsyncadd [#allocation3], %s1865
      %s1867 = sshll.u32 [#allocation2], 4
      %s1868 = int_to_ptr.vmem [resolvable:$true] %s1867
      %1873 = dma.vmem_to_hbm [thread:$0]  %s1868, 256, %s12, [#allocation3], 128, 128, 8
    $region53: #{tpu_custom_call.1} parent=1 // pred_fallthru
      _
    // Predicated region
    $region54: #{tpu_custom_call.1} parent=1 // pred_check
      _
    $region55: #{tpu_custom_call.1} parent=1 // pred_check_branch
      %1875 = sbr.rel (0) target = $region57
    $region56: #{tpu_custom_call.1} parent=1 // pred_region
      %1876 = dma.done [#allocation3], 256
    $region57: #{tpu_custom_call.1} parent=1 // pred_fallthru
      _
    %1877 = vsyncpa [#allocation3], 1

</llo_original>
